<compile_context>
chip_gen: v7x
topology: tpu7x:2x2x1
jax: 0.10.0
libtpu: 0.0.40
codegen_flags: <defaults>
</compile_context>

<pallas_src>
import functools

import jax
import jax.numpy as jnp
from jax import lax
from jax.experimental import pallas as pl
from jax.experimental.pallas import tpu as pltpu


def _cba_kernel(x_ref, w_ref, b_ref, o_ref, *, cin, cout, k, wi, wo, ho):
    """One grid step = one image.

    x_ref : (1, Hi, Cin*Wi)      input image, channels packed onto lanes (VMEM)
    w_ref : (Cin*K*K, Cout*Wo)   BN-folded, lane-replicated weight table (VMEM)
    b_ref : (1, Cout*Wo)         BN-folded, lane-replicated bias (VMEM)
    o_ref : (1, Ho, Cout*Wo)     lane-dense output (lane index = co*Wo + j)
    """
    lanes = cout * wo
    xv = x_ref[0].astype(jnp.float32)                    # (Hi, Cin*Wi), one load

    # Initialize the accumulator with the folded-BN bias (saves an epilogue add).
    acc = jnp.broadcast_to(b_ref[...], (ho, lanes)).astype(jnp.float32)

    for ci in range(cin):
        for kw in range(k):
            # One lane shift per (ci, kw); replicate across the Cout lane blocks
            # once so the inner kh loop is pure full-width VPU math over cheap
            # sublane-offset static slices.
            start = ci * wi + kw
            shifted = xv[:, start:start + wo]            # (Hi, Wo)
            tiled = jnp.tile(shifted, (1, cout))         # (Hi, Cout*Wo)
            for kh in range(k):
                tap = (ci * k + kh) * k + kw
                wrow = w_ref[tap:tap + 1, :]             # (1, Cout*Wo), f32
                acc = acc + wrow * tiled[kh:kh + ho, :]  # full-width FMA

    # ReLU epilogue + one unmasked, lane-dense store.
    o_ref[0] = jnp.maximum(acc, 0.0).astype(o_ref.dtype)


def cba_module_forward(x, w, gamma, beta, running_mean, running_var, eps=1e-5):
    """CBAModule.forward: ReLU(BN(Conv2d_s1_p0_nobias(x))), inference-mode BN.

    x : (N, Cin, H, W)    NCHW, f32 or bf16 (output dtype follows x)
    w : (Cout, Cin, K, K) OIHW (PyTorch Conv2d layout)
    returns (N, Cout, H-K+1, W-K+1), NCHW
    """
    n, cin, hi, wi = x.shape
    cout, cin_w, kh_, kw_ = w.shape
    assert cin_w == cin and kh_ == kw_, "square kernel / matching channels expected"
    k = kh_
    # TODO(synk): only CBAModule's default stride=1 / padding=0 are implemented;
    # a row-tiled path would only be needed for genuinely large H (not this module).
    ho, wo = hi - k + 1, wi - k + 1
    lanes = cout * wo
    ntaps = cin * k * k

    # Fold inference BatchNorm into the conv weight / bias (all in f32).
    scale = gamma.astype(jnp.float32) / jnp.sqrt(running_var.astype(jnp.float32) + eps)
    w_folded = w.astype(jnp.float32) * scale[:, None, None, None]          # OIHW
    bias = beta.astype(jnp.float32) - running_mean.astype(jnp.float32) * scale

    # Lane-replicated tables: w_tab[tap, co*Wo + j] = w_folded[co, ci, kh, kw].
    w_tab = jnp.repeat(
        jnp.transpose(w_folded, (1, 2, 3, 0)).reshape(ntaps, cout), wo, axis=1)
    b_tab = jnp.repeat(bias, wo)[None, :]                                  # (1, lanes)

    # Pack input channels onto lanes: x_packed[n, h, ci*Wi + w] = x[n, ci, h, w].
    x_packed = jnp.transpose(x, (0, 2, 1, 3)).reshape(n, hi, cin * wi)

    kernel = functools.partial(_cba_kernel, cin=cin, cout=cout, k=k,
                               wi=wi, wo=wo, ho=ho)

    out_packed = pl.pallas_call(
        kernel,
        out_shape=jax.ShapeDtypeStruct((n, ho, lanes), x.dtype),
        grid_spec=pltpu.PrefetchScalarGridSpec(
            num_scalar_prefetch=0,
            grid=(n,),
            in_specs=[
                # Full image per batch index (full-extent last two dims).
                pl.BlockSpec((1, hi, cin * wi), lambda b: (b, 0, 0)),
                # Small constant-index VMEM tables (resident across grid steps).
                pl.BlockSpec((ntaps, lanes), lambda b: (0, 0)),
                pl.BlockSpec((1, lanes), lambda b: (0, 0)),
            ],
            out_specs=pl.BlockSpec((1, ho, lanes), lambda b: (b, 0, 0)),
        ),
        compiler_params=pltpu.CompilerParams(
            dimension_semantics=("parallel",),
            vmem_limit_bytes=32 * 1024 * 1024,
        ),
    )(x_packed, w_tab, b_tab)

    # Trivial layout fixup (a few KiB): (N, Ho, Cout*Wo) -> NCHW.
    return jnp.transpose(out_packed.reshape(n, ho, cout, wo), (0, 2, 1, 3))


def _reference(x, w, gamma, beta, running_mean, running_var, eps=1e-5):
    """Pure-JAX reference: Conv2d (VALID, stride 1, no bias) + BN (eval) + ReLU."""
    y = lax.conv_general_dilated(
        x.astype(jnp.float32), w.astype(jnp.float32),
        window_strides=(1, 1), padding="VALID",
        dimension_numbers=("NCHW", "OIHW", "NCHW"))
    inv = 1.0 / jnp.sqrt(running_var + eps)
    y = (y - running_mean[None, :, None, None]) * (gamma * inv)[None, :, None, None] \
        + beta[None, :, None, None]
    return jnp.maximum(y, 0.0)


if __name__ == "__main__":
    # CBAModule(in_channels=4, out_channels=8, kernel_size=3, stride=1, padding=0)
    Cin, Cout = 4, 8
    key = jax.random.PRNGKey(0)
    kx, kx2, kw_, kg, kb, km, kv = jax.random.split(key, 7)

    w = 0.1 * jax.random.normal(kw_, (Cout, Cin, 3, 3), dtype=jnp.float32)   # OIHW
    gamma = 1.0 + 0.5 * jax.random.uniform(kg, (Cout,), dtype=jnp.float32)
    beta = 0.1 * jax.random.normal(kb, (Cout,), dtype=jnp.float32)
    run_mean = 0.1 * jax.random.normal(km, (Cout,), dtype=jnp.float32)
    run_var = 0.5 + jax.random.uniform(kv, (Cout,), dtype=jnp.float32)

    # Case 1: 18x18 input -> 16x16 output; Cout*Wo = 128 lanes (exact lane-dense).
    x = jax.random.normal(kx, (2, Cin, 18, 18), dtype=jnp.float32)
    out = jax.block_until_ready(
        cba_module_forward(x, w, gamma, beta, run_mean, run_var))
    ref = _reference(x, w, gamma, beta, run_mean, run_var)
    assert out.shape == (2, Cout, 16, 16), out.shape
    assert float(jnp.max(jnp.abs(out - ref))) < 1e-4, float(jnp.max(jnp.abs(out - ref)))

    # Case 2: 16x16 input -> 14x14 output (full-extent 112-lane block).
    x2 = jax.random.normal(kx2, (2, Cin, 16, 16), dtype=jnp.float32)
    out2 = jax.block_until_ready(
        cba_module_forward(x2, w, gamma, beta, run_mean, run_var))
    ref2 = _reference(x2, w, gamma, beta, run_mean, run_var)
    assert out2.shape == (2, Cout, 14, 14), out2.shape
    assert float(jnp.max(jnp.abs(out2 - ref2))) < 1e-4, float(jnp.max(jnp.abs(out2 - ref2)))

    # Case 3: bf16 I/O (storage-only; in-kernel accumulation stays f32).
    xb = x.astype(jnp.bfloat16)
    outb = jax.block_until_ready(
        cba_module_forward(xb, w, gamma, beta, run_mean, run_var))
    refb = _reference(xb.astype(jnp.float32), w, gamma, beta, run_mean, run_var)
    assert outb.dtype == jnp.bfloat16, outb.dtype
    err_b = float(jnp.max(jnp.abs(outb.astype(jnp.float32) - refb)))
    assert err_b < 5e-2, err_b

    print("KERNEL_OK")
</pallas_src>

<mosaic_0001>
module attributes {stable_mosaic.version = 11 : i64} {
  func.func @_cba_kernel(%arg0: i32, %arg1: memref<1x18x72xf32, #tpu.memory_space<vmem>>, %arg2: memref<36x128xf32, #tpu.memory_space<vmem>>, %arg3: memref<1x128xf32, #tpu.memory_space<vmem>>, %arg4: memref<1x16x128xf32, #tpu.memory_space<vmem>>) attributes {dimension_semantics = [#tpu.dimension_semantics<parallel>], iteration_bounds = array<i64: 2>, scalar_prefetch = 0 : i64, scratch_operands = 0 : i64, tpu.core_type = #tpu.core_type<tc>, window_params = [{transform_indices = @transform_0, window_bounds = array<i64: 1, 18, 72>}, {pipeline_mode = #tpu.pipeline_mode<synchronous>, transform_indices = @transform_1, window_bounds = array<i64: 36, 128>}, {pipeline_mode = #tpu.pipeline_mode<synchronous>, transform_indices = @transform_2, window_bounds = array<i64: 1, 128>}, {transform_indices = @transform_3, window_bounds = array<i64: 1, 16, 128>}]} {
    %c0 = arith.constant 0 : index
    %c0_0 = arith.constant 0 : index
    %c0_1 = arith.constant 0 : index
    %0 = vector.load %arg1[%c0, %c0_0, %c0_1] : memref<1x18x72xf32, #tpu.memory_space<vmem>>, vector<1x18x72xf32>
    %1 = vector.shape_cast %0 : vector<1x18x72xf32> to vector<18x72xf32>
    %c0_2 = arith.constant 0 : index
    %c0_3 = arith.constant 0 : index
    %2 = vector.load %arg3[%c0_2, %c0_3] : memref<1x128xf32, #tpu.memory_space<vmem>>, vector<1x128xf32>
    %3 = vector.shape_cast %2 : vector<1x128xf32> to vector<1x128xf32>
    %4 = vector.broadcast %3 : vector<1x128xf32> to vector<16x128xf32>
    %5 = vector.extract_strided_slice %1 {offsets = [0, 0], sizes = [18, 16], strides = [1, 1]} : vector<18x72xf32> to vector<18x16xf32>
    %6 = tpu.concatenate %5, %5, %5, %5, %5, %5, %5, %5 in 1 : vector<18x16xf32>, vector<18x16xf32>, vector<18x16xf32>, vector<18x16xf32>, vector<18x16xf32>, vector<18x16xf32>, vector<18x16xf32>, vector<18x16xf32> -> vector<18x128xf32>
    %c0_4 = arith.constant 0 : index
    %c0_5 = arith.constant 0 : index
    %7 = vector.load %arg2[%c0_4, %c0_5] : memref<36x128xf32, #tpu.memory_space<vmem>>, vector<1x128xf32>
    %8 = vector.extract_strided_slice %6 {offsets = [0, 0], sizes = [16, 128], strides = [1, 1]} : vector<18x128xf32> to vector<16x128xf32>
    %9 = vector.broadcast %7 : vector<1x128xf32> to vector<16x128xf32>
    %10 = arith.mulf %9, %8 : vector<16x128xf32>
    %11 = arith.addf %4, %10 : vector<16x128xf32>
    %c3 = arith.constant 3 : index
    %c0_6 = arith.constant 0 : index
    %12 = vector.load %arg2[%c3, %c0_6] : memref<36x128xf32, #tpu.memory_space<vmem>>, vector<1x128xf32>
    %13 = vector.extract_strided_slice %6 {offsets = [1, 0], sizes = [16, 128], strides = [1, 1]} : vector<18x128xf32> to vector<16x128xf32>
    %14 = vector.broadcast %12 : vector<1x128xf32> to vector<16x128xf32>
    %15 = arith.mulf %14, %13 : vector<16x128xf32>
    %16 = arith.addf %11, %15 : vector<16x128xf32>
    %c6 = arith.constant 6 : index
    %c0_7 = arith.constant 0 : index
    %17 = vector.load %arg2[%c6, %c0_7] : memref<36x128xf32, #tpu.memory_space<vmem>>, vector<1x128xf32>
    %18 = vector.extract_strided_slice %6 {offsets = [2, 0], sizes = [16, 128], strides = [1, 1]} : vector<18x128xf32> to vector<16x128xf32>
    %19 = vector.broadcast %17 : vector<1x128xf32> to vector<16x128xf32>
    %20 = arith.mulf %19, %18 : vector<16x128xf32>
    %21 = arith.addf %16, %20 : vector<16x128xf32>
    %22 = vector.extract_strided_slice %1 {offsets = [0, 1], sizes = [18, 16], strides = [1, 1]} : vector<18x72xf32> to vector<18x16xf32>
    %23 = tpu.concatenate %22, %22, %22, %22, %22, %22, %22, %22 in 1 : vector<18x16xf32>, vector<18x16xf32>, vector<18x16xf32>, vector<18x16xf32>, vector<18x16xf32>, vector<18x16xf32>, vector<18x16xf32>, vector<18x16xf32> -> vector<18x128xf32>
    %c1 = arith.constant 1 : index
    %c0_8 = arith.constant 0 : index
    %24 = vector.load %arg2[%c1, %c0_8] : memref<36x128xf32, #tpu.memory_space<vmem>>, vector<1x128xf32>
    %25 = vector.extract_strided_slice %23 {offsets = [0, 0], sizes = [16, 128], strides = [1, 1]} : vector<18x128xf32> to vector<16x128xf32>
    %26 = vector.broadcast %24 : vector<1x128xf32> to vector<16x128xf32>
    %27 = arith.mulf %26, %25 : vector<16x128xf32>
    %28 = arith.addf %21, %27 : vector<16x128xf32>
    %c4 = arith.constant 4 : index
    %c0_9 = arith.constant 0 : index
    %29 = vector.load %arg2[%c4, %c0_9] : memref<36x128xf32, #tpu.memory_space<vmem>>, vector<1x128xf32>
    %30 = vector.extract_strided_slice %23 {offsets = [1, 0], sizes = [16, 128], strides = [1, 1]} : vector<18x128xf32> to vector<16x128xf32>
    %31 = vector.broadcast %29 : vector<1x128xf32> to vector<16x128xf32>
    %32 = arith.mulf %31, %30 : vector<16x128xf32>
    %33 = arith.addf %28, %32 : vector<16x128xf32>
    %c7 = arith.constant 7 : index
    %c0_10 = arith.constant 0 : index
    %34 = vector.load %arg2[%c7, %c0_10] : memref<36x128xf32, #tpu.memory_space<vmem>>, vector<1x128xf32>
    %35 = vector.extract_strided_slice %23 {offsets = [2, 0], sizes = [16, 128], strides = [1, 1]} : vector<18x128xf32> to vector<16x128xf32>
    %36 = vector.broadcast %34 : vector<1x128xf32> to vector<16x128xf32>
    %37 = arith.mulf %36, %35 : vector<16x128xf32>
    %38 = arith.addf %33, %37 : vector<16x128xf32>
    %39 = vector.extract_strided_slice %1 {offsets = [0, 2], sizes = [18, 16], strides = [1, 1]} : vector<18x72xf32> to vector<18x16xf32>
    %40 = tpu.concatenate %39, %39, %39, %39, %39, %39, %39, %39 in 1 : vector<18x16xf32>, vector<18x16xf32>, vector<18x16xf32>, vector<18x16xf32>, vector<18x16xf32>, vector<18x16xf32>, vector<18x16xf32>, vector<18x16xf32> -> vector<18x128xf32>
    %c2 = arith.constant 2 : index
    %c0_11 = arith.constant 0 : index
    %41 = vector.load %arg2[%c2, %c0_11] : memref<36x128xf32, #tpu.memory_space<vmem>>, vector<1x128xf32>
    %42 = vector.extract_strided_slice %40 {offsets = [0, 0], sizes = [16, 128], strides = [1, 1]} : vector<18x128xf32> to vector<16x128xf32>
    %43 = vector.broadcast %41 : vector<1x128xf32> to vector<16x128xf32>
    %44 = arith.mulf %43, %42 : vector<16x128xf32>
    %45 = arith.addf %38, %44 : vector<16x128xf32>
    %c5 = arith.constant 5 : index
    %c0_12 = arith.constant 0 : index
    %46 = vector.load %arg2[%c5, %c0_12] : memref<36x128xf32, #tpu.memory_space<vmem>>, vector<1x128xf32>
    %47 = vector.extract_strided_slice %40 {offsets = [1, 0], sizes = [16, 128], strides = [1, 1]} : vector<18x128xf32> to vector<16x128xf32>
    %48 = vector.broadcast %46 : vector<1x128xf32> to vector<16x128xf32>
    %49 = arith.mulf %48, %47 : vector<16x128xf32>
    %50 = arith.addf %45, %49 : vector<16x128xf32>
    %c8 = arith.constant 8 : index
    %c0_13 = arith.constant 0 : index
    %51 = vector.load %arg2[%c8, %c0_13] : memref<36x128xf32, #tpu.memory_space<vmem>>, vector<1x128xf32>
    %52 = vector.extract_strided_slice %40 {offsets = [2, 0], sizes = [16, 128], strides = [1, 1]} : vector<18x128xf32> to vector<16x128xf32>
    %53 = vector.broadcast %51 : vector<1x128xf32> to vector<16x128xf32>
    %54 = arith.mulf %53, %52 : vector<16x128xf32>
    %55 = arith.addf %50, %54 : vector<16x128xf32>
    %56 = vector.extract_strided_slice %1 {offsets = [0, 18], sizes = [18, 16], strides = [1, 1]} : vector<18x72xf32> to vector<18x16xf32>
    %57 = tpu.concatenate %56, %56, %56, %56, %56, %56, %56, %56 in 1 : vector<18x16xf32>, vector<18x16xf32>, vector<18x16xf32>, vector<18x16xf32>, vector<18x16xf32>, vector<18x16xf32>, vector<18x16xf32>, vector<18x16xf32> -> vector<18x128xf32>
    %c9 = arith.constant 9 : index
    %c0_14 = arith.constant 0 : index
    %58 = vector.load %arg2[%c9, %c0_14] : memref<36x128xf32, #tpu.memory_space<vmem>>, vector<1x128xf32>
    %59 = vector.extract_strided_slice %57 {offsets = [0, 0], sizes = [16, 128], strides = [1, 1]} : vector<18x128xf32> to vector<16x128xf32>
    %60 = vector.broadcast %58 : vector<1x128xf32> to vector<16x128xf32>
    %61 = arith.mulf %60, %59 : vector<16x128xf32>
    %62 = arith.addf %55, %61 : vector<16x128xf32>
    %c12 = arith.constant 12 : index
    %c0_15 = arith.constant 0 : index
    %63 = vector.load %arg2[%c12, %c0_15] : memref<36x128xf32, #tpu.memory_space<vmem>>, vector<1x128xf32>
    %64 = vector.extract_strided_slice %57 {offsets = [1, 0], sizes = [16, 128], strides = [1, 1]} : vector<18x128xf32> to vector<16x128xf32>
    %65 = vector.broadcast %63 : vector<1x128xf32> to vector<16x128xf32>
    %66 = arith.mulf %65, %64 : vector<16x128xf32>
    %67 = arith.addf %62, %66 : vector<16x128xf32>
    %c15 = arith.constant 15 : index
    %c0_16 = arith.constant 0 : index
    %68 = vector.load %arg2[%c15, %c0_16] : memref<36x128xf32, #tpu.memory_space<vmem>>, vector<1x128xf32>
    %69 = vector.extract_strided_slice %57 {offsets = [2, 0], sizes = [16, 128], strides = [1, 1]} : vector<18x128xf32> to vector<16x128xf32>
    %70 = vector.broadcast %68 : vector<1x128xf32> to vector<16x128xf32>
    %71 = arith.mulf %70, %69 : vector<16x128xf32>
    %72 = arith.addf %67, %71 : vector<16x128xf32>
    %73 = vector.extract_strided_slice %1 {offsets = [0, 19], sizes = [18, 16], strides = [1, 1]} : vector<18x72xf32> to vector<18x16xf32>
    %74 = tpu.concatenate %73, %73, %73, %73, %73, %73, %73, %73 in 1 : vector<18x16xf32>, vector<18x16xf32>, vector<18x16xf32>, vector<18x16xf32>, vector<18x16xf32>, vector<18x16xf32>, vector<18x16xf32>, vector<18x16xf32> -> vector<18x128xf32>
    %c10 = arith.constant 10 : index
    %c0_17 = arith.constant 0 : index
    %75 = vector.load %arg2[%c10, %c0_17] : memref<36x128xf32, #tpu.memory_space<vmem>>, vector<1x128xf32>
    %76 = vector.extract_strided_slice %74 {offsets = [0, 0], sizes = [16, 128], strides = [1, 1]} : vector<18x128xf32> to vector<16x128xf32>
    %77 = vector.broadcast %75 : vector<1x128xf32> to vector<16x128xf32>
    %78 = arith.mulf %77, %76 : vector<16x128xf32>
    %79 = arith.addf %72, %78 : vector<16x128xf32>
    %c13 = arith.constant 13 : index
    %c0_18 = arith.constant 0 : index
    %80 = vector.load %arg2[%c13, %c0_18] : memref<36x128xf32, #tpu.memory_space<vmem>>, vector<1x128xf32>
    %81 = vector.extract_strided_slice %74 {offsets = [1, 0], sizes = [16, 128], strides = [1, 1]} : vector<18x128xf32> to vector<16x128xf32>
    %82 = vector.broadcast %80 : vector<1x128xf32> to vector<16x128xf32>
    %83 = arith.mulf %82, %81 : vector<16x128xf32>
    %84 = arith.addf %79, %83 : vector<16x128xf32>
    %c16 = arith.constant 16 : index
    %c0_19 = arith.constant 0 : index
    %85 = vector.load %arg2[%c16, %c0_19] : memref<36x128xf32, #tpu.memory_space<vmem>>, vector<1x128xf32>
    %86 = vector.extract_strided_slice %74 {offsets = [2, 0], sizes = [16, 128], strides = [1, 1]} : vector<18x128xf32> to vector<16x128xf32>
    %87 = vector.broadcast %85 : vector<1x128xf32> to vector<16x128xf32>
    %88 = arith.mulf %87, %86 : vector<16x128xf32>
    %89 = arith.addf %84, %88 : vector<16x128xf32>
    %90 = vector.extract_strided_slice %1 {offsets = [0, 20], sizes = [18, 16], strides = [1, 1]} : vector<18x72xf32> to vector<18x16xf32>
    %91 = tpu.concatenate %90, %90, %90, %90, %90, %90, %90, %90 in 1 : vector<18x16xf32>, vector<18x16xf32>, vector<18x16xf32>, vector<18x16xf32>, vector<18x16xf32>, vector<18x16xf32>, vector<18x16xf32>, vector<18x16xf32> -> vector<18x128xf32>
    %c11 = arith.constant 11 : index
    %c0_20 = arith.constant 0 : index
    %92 = vector.load %arg2[%c11, %c0_20] : memref<36x128xf32, #tpu.memory_space<vmem>>, vector<1x128xf32>
    %93 = vector.extract_strided_slice %91 {offsets = [0, 0], sizes = [16, 128], strides = [1, 1]} : vector<18x128xf32> to vector<16x128xf32>
    %94 = vector.broadcast %92 : vector<1x128xf32> to vector<16x128xf32>
    %95 = arith.mulf %94, %93 : vector<16x128xf32>
    %96 = arith.addf %89, %95 : vector<16x128xf32>
    %c14 = arith.constant 14 : index
    %c0_21 = arith.constant 0 : index
    %97 = vector.load %arg2[%c14, %c0_21] : memref<36x128xf32, #tpu.memory_space<vmem>>, vector<1x128xf32>
    %98 = vector.extract_strided_slice %91 {offsets = [1, 0], sizes = [16, 128], strides = [1, 1]} : vector<18x128xf32> to vector<16x128xf32>
    %99 = vector.broadcast %97 : vector<1x128xf32> to vector<16x128xf32>
    %100 = arith.mulf %99, %98 : vector<16x128xf32>
    %101 = arith.addf %96, %100 : vector<16x128xf32>
    %c17 = arith.constant 17 : index
    %c0_22 = arith.constant 0 : index
    %102 = vector.load %arg2[%c17, %c0_22] : memref<36x128xf32, #tpu.memory_space<vmem>>, vector<1x128xf32>
    %103 = vector.extract_strided_slice %91 {offsets = [2, 0], sizes = [16, 128], strides = [1, 1]} : vector<18x128xf32> to vector<16x128xf32>
    %104 = vector.broadcast %102 : vector<1x128xf32> to vector<16x128xf32>
    %105 = arith.mulf %104, %103 : vector<16x128xf32>
    %106 = arith.addf %101, %105 : vector<16x128xf32>
    %107 = vector.extract_strided_slice %1 {offsets = [0, 36], sizes = [18, 16], strides = [1, 1]} : vector<18x72xf32> to vector<18x16xf32>
    %108 = tpu.concatenate %107, %107, %107, %107, %107, %107, %107, %107 in 1 : vector<18x16xf32>, vector<18x16xf32>, vector<18x16xf32>, vector<18x16xf32>, vector<18x16xf32>, vector<18x16xf32>, vector<18x16xf32>, vector<18x16xf32> -> vector<18x128xf32>
    %c18 = arith.constant 18 : index
    %c0_23 = arith.constant 0 : index
    %109 = vector.load %arg2[%c18, %c0_23] : memref<36x128xf32, #tpu.memory_space<vmem>>, vector<1x128xf32>
    %110 = vector.extract_strided_slice %108 {offsets = [0, 0], sizes = [16, 128], strides = [1, 1]} : vector<18x128xf32> to vector<16x128xf32>
    %111 = vector.broadcast %109 : vector<1x128xf32> to vector<16x128xf32>
    %112 = arith.mulf %111, %110 : vector<16x128xf32>
    %113 = arith.addf %106, %112 : vector<16x128xf32>
    %c21 = arith.constant 21 : index
    %c0_24 = arith.constant 0 : index
    %114 = vector.load %arg2[%c21, %c0_24] : memref<36x128xf32, #tpu.memory_space<vmem>>, vector<1x128xf32>
    %115 = vector.extract_strided_slice %108 {offsets = [1, 0], sizes = [16, 128], strides = [1, 1]} : vector<18x128xf32> to vector<16x128xf32>
    %116 = vector.broadcast %114 : vector<1x128xf32> to vector<16x128xf32>
    %117 = arith.mulf %116, %115 : vector<16x128xf32>
    %118 = arith.addf %113, %117 : vector<16x128xf32>
    %c24 = arith.constant 24 : index
    %c0_25 = arith.constant 0 : index
    %119 = vector.load %arg2[%c24, %c0_25] : memref<36x128xf32, #tpu.memory_space<vmem>>, vector<1x128xf32>
    %120 = vector.extract_strided_slice %108 {offsets = [2, 0], sizes = [16, 128], strides = [1, 1]} : vector<18x128xf32> to vector<16x128xf32>
    %121 = vector.broadcast %119 : vector<1x128xf32> to vector<16x128xf32>
    %122 = arith.mulf %121, %120 : vector<16x128xf32>
    %123 = arith.addf %118, %122 : vector<16x128xf32>
    %124 = vector.extract_strided_slice %1 {offsets = [0, 37], sizes = [18, 16], strides = [1, 1]} : vector<18x72xf32> to vector<18x16xf32>
    %125 = tpu.concatenate %124, %124, %124, %124, %124, %124, %124, %124 in 1 : vector<18x16xf32>, vector<18x16xf32>, vector<18x16xf32>, vector<18x16xf32>, vector<18x16xf32>, vector<18x16xf32>, vector<18x16xf32>, vector<18x16xf32> -> vector<18x128xf32>
    %c19 = arith.constant 19 : index
    %c0_26 = arith.constant 0 : index
    %126 = vector.load %arg2[%c19, %c0_26] : memref<36x128xf32, #tpu.memory_space<vmem>>, vector<1x128xf32>
    %127 = vector.extract_strided_slice %125 {offsets = [0, 0], sizes = [16, 128], strides = [1, 1]} : vector<18x128xf32> to vector<16x128xf32>
    %128 = vector.broadcast %126 : vector<1x128xf32> to vector<16x128xf32>
    %129 = arith.mulf %128, %127 : vector<16x128xf32>
    %130 = arith.addf %123, %129 : vector<16x128xf32>
    %c22 = arith.constant 22 : index
    %c0_27 = arith.constant 0 : index
    %131 = vector.load %arg2[%c22, %c0_27] : memref<36x128xf32, #tpu.memory_space<vmem>>, vector<1x128xf32>
    %132 = vector.extract_strided_slice %125 {offsets = [1, 0], sizes = [16, 128], strides = [1, 1]} : vector<18x128xf32> to vector<16x128xf32>
    %133 = vector.broadcast %131 : vector<1x128xf32> to vector<16x128xf32>
    %134 = arith.mulf %133, %132 : vector<16x128xf32>
    %135 = arith.addf %130, %134 : vector<16x128xf32>
    %c25 = arith.constant 25 : index
    %c0_28 = arith.constant 0 : index
    %136 = vector.load %arg2[%c25, %c0_28] : memref<36x128xf32, #tpu.memory_space<vmem>>, vector<1x128xf32>
    %137 = vector.extract_strided_slice %125 {offsets = [2, 0], sizes = [16, 128], strides = [1, 1]} : vector<18x128xf32> to vector<16x128xf32>
    %138 = vector.broadcast %136 : vector<1x128xf32> to vector<16x128xf32>
    %139 = arith.mulf %138, %137 : vector<16x128xf32>
    %140 = arith.addf %135, %139 : vector<16x128xf32>
    %141 = vector.extract_strided_slice %1 {offsets = [0, 38], sizes = [18, 16], strides = [1, 1]} : vector<18x72xf32> to vector<18x16xf32>
    %142 = tpu.concatenate %141, %141, %141, %141, %141, %141, %141, %141 in 1 : vector<18x16xf32>, vector<18x16xf32>, vector<18x16xf32>, vector<18x16xf32>, vector<18x16xf32>, vector<18x16xf32>, vector<18x16xf32>, vector<18x16xf32> -> vector<18x128xf32>
    %c20 = arith.constant 20 : index
    %c0_29 = arith.constant 0 : index
    %143 = vector.load %arg2[%c20, %c0_29] : memref<36x128xf32, #tpu.memory_space<vmem>>, vector<1x128xf32>
    %144 = vector.extract_strided_slice %142 {offsets = [0, 0], sizes = [16, 128], strides = [1, 1]} : vector<18x128xf32> to vector<16x128xf32>
    %145 = vector.broadcast %143 : vector<1x128xf32> to vector<16x128xf32>
    %146 = arith.mulf %145, %144 : vector<16x128xf32>
    %147 = arith.addf %140, %146 : vector<16x128xf32>
    %c23 = arith.constant 23 : index
    %c0_30 = arith.constant 0 : index
    %148 = vector.load %arg2[%c23, %c0_30] : memref<36x128xf32, #tpu.memory_space<vmem>>, vector<1x128xf32>
    %149 = vector.extract_strided_slice %142 {offsets = [1, 0], sizes = [16, 128], strides = [1, 1]} : vector<18x128xf32> to vector<16x128xf32>
    %150 = vector.broadcast %148 : vector<1x128xf32> to vector<16x128xf32>
    %151 = arith.mulf %150, %149 : vector<16x128xf32>
    %152 = arith.addf %147, %151 : vector<16x128xf32>
    %c26 = arith.constant 26 : index
    %c0_31 = arith.constant 0 : index
    %153 = vector.load %arg2[%c26, %c0_31] : memref<36x128xf32, #tpu.memory_space<vmem>>, vector<1x128xf32>
    %154 = vector.extract_strided_slice %142 {offsets = [2, 0], sizes = [16, 128], strides = [1, 1]} : vector<18x128xf32> to vector<16x128xf32>
    %155 = vector.broadcast %153 : vector<1x128xf32> to vector<16x128xf32>
    %156 = arith.mulf %155, %154 : vector<16x128xf32>
    %157 = arith.addf %152, %156 : vector<16x128xf32>
    %158 = vector.extract_strided_slice %1 {offsets = [0, 54], sizes = [18, 16], strides = [1, 1]} : vector<18x72xf32> to vector<18x16xf32>
    %159 = tpu.concatenate %158, %158, %158, %158, %158, %158, %158, %158 in 1 : vector<18x16xf32>, vector<18x16xf32>, vector<18x16xf32>, vector<18x16xf32>, vector<18x16xf32>, vector<18x16xf32>, vector<18x16xf32>, vector<18x16xf32> -> vector<18x128xf32>
    %c27 = arith.constant 27 : index
    %c0_32 = arith.constant 0 : index
    %160 = vector.load %arg2[%c27, %c0_32] : memref<36x128xf32, #tpu.memory_space<vmem>>, vector<1x128xf32>
    %161 = vector.extract_strided_slice %159 {offsets = [0, 0], sizes = [16, 128], strides = [1, 1]} : vector<18x128xf32> to vector<16x128xf32>
    %162 = vector.broadcast %160 : vector<1x128xf32> to vector<16x128xf32>
    %163 = arith.mulf %162, %161 : vector<16x128xf32>
    %164 = arith.addf %157, %163 : vector<16x128xf32>
    %c30 = arith.constant 30 : index
    %c0_33 = arith.constant 0 : index
    %165 = vector.load %arg2[%c30, %c0_33] : memref<36x128xf32, #tpu.memory_space<vmem>>, vector<1x128xf32>
    %166 = vector.extract_strided_slice %159 {offsets = [1, 0], sizes = [16, 128], strides = [1, 1]} : vector<18x128xf32> to vector<16x128xf32>
    %167 = vector.broadcast %165 : vector<1x128xf32> to vector<16x128xf32>
    %168 = arith.mulf %167, %166 : vector<16x128xf32>
    %169 = arith.addf %164, %168 : vector<16x128xf32>
    %c33 = arith.constant 33 : index
    %c0_34 = arith.constant 0 : index
    %170 = vector.load %arg2[%c33, %c0_34] : memref<36x128xf32, #tpu.memory_space<vmem>>, vector<1x128xf32>
    %171 = vector.extract_strided_slice %159 {offsets = [2, 0], sizes = [16, 128], strides = [1, 1]} : vector<18x128xf32> to vector<16x128xf32>
    %172 = vector.broadcast %170 : vector<1x128xf32> to vector<16x128xf32>
    %173 = arith.mulf %172, %171 : vector<16x128xf32>
    %174 = arith.addf %169, %173 : vector<16x128xf32>
    %175 = vector.extract_strided_slice %1 {offsets = [0, 55], sizes = [18, 16], strides = [1, 1]} : vector<18x72xf32> to vector<18x16xf32>
    %176 = tpu.concatenate %175, %175, %175, %175, %175, %175, %175, %175 in 1 : vector<18x16xf32>, vector<18x16xf32>, vector<18x16xf32>, vector<18x16xf32>, vector<18x16xf32>, vector<18x16xf32>, vector<18x16xf32>, vector<18x16xf32> -> vector<18x128xf32>
    %c28 = arith.constant 28 : index
    %c0_35 = arith.constant 0 : index
    %177 = vector.load %arg2[%c28, %c0_35] : memref<36x128xf32, #tpu.memory_space<vmem>>, vector<1x128xf32>
    %178 = vector.extract_strided_slice %176 {offsets = [0, 0], sizes = [16, 128], strides = [1, 1]} : vector<18x128xf32> to vector<16x128xf32>
    %179 = vector.broadcast %177 : vector<1x128xf32> to vector<16x128xf32>
    %180 = arith.mulf %179, %178 : vector<16x128xf32>
    %181 = arith.addf %174, %180 : vector<16x128xf32>
    %c31 = arith.constant 31 : index
    %c0_36 = arith.constant 0 : index
    %182 = vector.load %arg2[%c31, %c0_36] : memref<36x128xf32, #tpu.memory_space<vmem>>, vector<1x128xf32>
    %183 = vector.extract_strided_slice %176 {offsets = [1, 0], sizes = [16, 128], strides = [1, 1]} : vector<18x128xf32> to vector<16x128xf32>
    %184 = vector.broadcast %182 : vector<1x128xf32> to vector<16x128xf32>
    %185 = arith.mulf %184, %183 : vector<16x128xf32>
    %186 = arith.addf %181, %185 : vector<16x128xf32>
    %c34 = arith.constant 34 : index
    %c0_37 = arith.constant 0 : index
    %187 = vector.load %arg2[%c34, %c0_37] : memref<36x128xf32, #tpu.memory_space<vmem>>, vector<1x128xf32>
    %188 = vector.extract_strided_slice %176 {offsets = [2, 0], sizes = [16, 128], strides = [1, 1]} : vector<18x128xf32> to vector<16x128xf32>
    %189 = vector.broadcast %187 : vector<1x128xf32> to vector<16x128xf32>
    %190 = arith.mulf %189, %188 : vector<16x128xf32>
    %191 = arith.addf %186, %190 : vector<16x128xf32>
    %192 = vector.extract_strided_slice %1 {offsets = [0, 56], sizes = [18, 16], strides = [1, 1]} : vector<18x72xf32> to vector<18x16xf32>
    %193 = tpu.concatenate %192, %192, %192, %192, %192, %192, %192, %192 in 1 : vector<18x16xf32>, vector<18x16xf32>, vector<18x16xf32>, vector<18x16xf32>, vector<18x16xf32>, vector<18x16xf32>, vector<18x16xf32>, vector<18x16xf32> -> vector<18x128xf32>
    %c29 = arith.constant 29 : index
    %c0_38 = arith.constant 0 : index
    %194 = vector.load %arg2[%c29, %c0_38] : memref<36x128xf32, #tpu.memory_space<vmem>>, vector<1x128xf32>
    %195 = vector.extract_strided_slice %193 {offsets = [0, 0], sizes = [16, 128], strides = [1, 1]} : vector<18x128xf32> to vector<16x128xf32>
    %196 = vector.broadcast %194 : vector<1x128xf32> to vector<16x128xf32>
    %197 = arith.mulf %196, %195 : vector<16x128xf32>
    %198 = arith.addf %191, %197 : vector<16x128xf32>
    %c32 = arith.constant 32 : index
    %c0_39 = arith.constant 0 : index
    %199 = vector.load %arg2[%c32, %c0_39] : memref<36x128xf32, #tpu.memory_space<vmem>>, vector<1x128xf32>
    %200 = vector.extract_strided_slice %193 {offsets = [1, 0], sizes = [16, 128], strides = [1, 1]} : vector<18x128xf32> to vector<16x128xf32>
    %201 = vector.broadcast %199 : vector<1x128xf32> to vector<16x128xf32>
    %202 = arith.mulf %201, %200 : vector<16x128xf32>
    %203 = arith.addf %198, %202 : vector<16x128xf32>
    %c35 = arith.constant 35 : index
    %c0_40 = arith.constant 0 : index
    %204 = vector.load %arg2[%c35, %c0_40] : memref<36x128xf32, #tpu.memory_space<vmem>>, vector<1x128xf32>
    %205 = vector.extract_strided_slice %193 {offsets = [2, 0], sizes = [16, 128], strides = [1, 1]} : vector<18x128xf32> to vector<16x128xf32>
    %206 = vector.broadcast %204 : vector<1x128xf32> to vector<16x128xf32>
    %207 = arith.mulf %206, %205 : vector<16x128xf32>
    %208 = arith.addf %203, %207 : vector<16x128xf32>
    %cst = arith.constant 0.000000e+00 : f32
    %209 = vector.broadcast %cst : f32 to vector<16x128xf32>
    %210 = arith.maximumf %208, %209 : vector<16x128xf32>
    %c0_41 = arith.constant 0 : index
    %c0_42 = arith.constant 0 : index
    %c0_43 = arith.constant 0 : index
    %211 = vector.load %arg4[%c0_41, %c0_42, %c0_43] : memref<1x16x128xf32, #tpu.memory_space<vmem>>, vector<1x16x128xf32>
    %212 = vector.shape_cast %211 : vector<1x16x128xf32> to vector<16x128xf32>
    %213 = vector.shape_cast %210 : vector<16x128xf32> to vector<1x16x128xf32>
    tpu.vector_store %arg4[%c0_41, %c0_42, %c0_43], %213 {strides = array<i32>} : memref<1x16x128xf32, #tpu.memory_space<vmem>>, vector<1x16x128xf32>,
    return
  }
  func.func @transform_0(%arg0: i32) -> (i32, i32, i32) {
    %c0_i32 = arith.constant 0 : i32
    %c0_i32_0 = arith.constant 0 : i32
    %c0_i32_1 = arith.constant 0 : i32
    return %arg0, %c0_i32, %c0_i32_0 : i32, i32, i32
  }
  func.func @transform_1(%arg0: i32) -> (i32, i32) {
    %c0_i32 = arith.constant 0 : i32
    %c0_i32_0 = arith.constant 0 : i32
    %c0_i32_1 = arith.constant 0 : i32
    return %c0_i32, %c0_i32_0 : i32, i32
  }
  func.func @transform_2(%arg0: i32) -> (i32, i32) {
    %c0_i32 = arith.constant 0 : i32
    %c0_i32_0 = arith.constant 0 : i32
    %c0_i32_1 = arith.constant 0 : i32
    return %c0_i32, %c0_i32_0 : i32, i32
  }
  func.func @transform_3(%arg0: i32) -> (i32, i32, i32) {
    %c0_i32 = arith.constant 0 : i32
    %c0_i32_0 = arith.constant 0 : i32
    %c0_i32_1 = arith.constant 0 : i32
    return %arg0, %c0_i32, %c0_i32_0 : i32, i32, i32
  }
}

</mosaic_0001>

<llo_original>
// kernel: tpu_custom_call.1
$region0: #{tpu_custom_call.1}
  #allocation0 [shape = 'u32[]', space=smem, size = 0x4, offset = 0x4, fixed_abs, tag = 'smem constant byte address 0x4 - core index']
  #allocation1 [shape = 'u32[144,128]{1,0:T(1,128)}', space=vmem, size = 0x12000, scoped, tag = 'internal scratch']
  %s0 = inlined_call_operand.vmem [shape: f32[2,18,72], index: 0, kind: input, shape index: {}]
  %s1 = inlined_call_operand.vmem [shape: f32[36,128], index: 1, kind: input, shape index: {}]
  %s2 = inlined_call_operand.vmem [shape: f32[1,128], index: 2, kind: input, shape index: {}]
  %s3 = inlined_call_operand.hbm [shape: f32[2,16,128], index: 3, kind: output, shape index: {}]
  %s4 = sld [smem:[#allocation0]]
  $region45: #{tpu_custom_call.1} parent=0
    _
  %s6 = ssub.s32 1, %s4
  %s7 = scalar_select 0, %s6, %s4
  $region1: #{tpu_custom_call.1} parent=0
    #allocation2 [shape = 'u8[16384]{0}', space=vmem, size = 0x4000, scoped, tag = 'output window, operand 0']
    #allocation3 [shape = 's32[2]{0}', space=sflag, size = 0x8, scoped, tag = 'scoped memory for tpu_custom_call.1']
    %8 = vsyncpa [#allocation3], 0
    %s9 = scalar_lea.sflag [#allocation3], 1
    %10 = vsyncpa %s9, 0
    loop: start=0, step=1, limit=4
    $region2: #{tpu_custom_call.1} parent=1 // loop_pre_header
      _
    $region3: #{tpu_custom_call.1} parent=1 // loop_header
      %s12 = sphi 0, %s16
      %p13 = scmp.ge.s32.totalorder %s12, 4
      %s22 = sphi 0, %s24
      %s25 = sphi 0, %s22
      %s26 = sphi 0, %s25
      %s42 = sphi 0, %s26
      %s46 = sphi 0, %s46
      %s48 = sphi 0, %s46
      %s49 = sphi 0, %s48
      %s63 = sphi 0, %s49
      %s67 = sphi 0, %s67
      %s69 = sphi 0, %s67
      %s70 = sphi 0, %s69
      %s84 = sphi 0, %s70
      %s90 = sphi 0, %s92
      %s93 = sphi 0, %s90
      %s94 = sphi 0, %s93
      %s110 = sphi 0, %s94
    $region4: #{tpu_custom_call.1} parent=1 // loop_header_branch
      %15 = sbr.rel (%p13) target = $region8
    $region5: #{tpu_custom_call.1} parent=1 // loop_body
      %s17 = ssub.s32 %s12, 1
      %s18 = ssub.s32 %s12, 2
      %s19 = sadd.s32 %s12, 1
      %s20 = ssub.s32 %s12, %s19
      %p21 = scmp.eq.s32.totalorder %s20, 0
      %s23 = sadd.s32 %s22, 1
      %s24 = scalar_select %p21, %s22, %s23
      %p27 = pneg %p21
      %p28 = scmp.eq.s32.totalorder %s12, 1
      %p29 = por %p27, %p28
      %p30 = scmp.ne.s32.totalorder %s22, %s25
      %p31 = scmp.eq.s32.totalorder %s12, 0
      %p32 = por %p30, %p31
      %p33 = scmp.ne.s32.totalorder %s22, %s25
      %p34 = scmp.eq.s32.totalorder %s17, 1
      %p35 = por %p33, %p34
      %p36 = scmp.ne.s32.totalorder %s25, %s26
      %p37 = scmp.eq.s32.totalorder %s17, 0
      %p38 = por %p36, %p37
      %p39 = scmp.ne.s32.totalorder %s25, %s26
      %p40 = scmp.eq.s32.totalorder %s18, 1
      %p41 = por %p39, %p40
      %p43 = scmp.ne.s32.totalorder %s26, %s42
      %p44 = scmp.eq.s32.totalorder %s18, 0
      %p45 = por %p43, %p44
      %s47 = sadd.s32 %s46, 1
      %p50 = scmp.eq.s32.totalorder %s12, 1
      %p51 = scmp.ne.s32.totalorder %s46, %s48
      %p52 = scmp.eq.s32.totalorder %s12, 0
      %p53 = por %p51, %p52
      %p54 = scmp.ne.s32.totalorder %s46, %s48
      %p55 = scmp.eq.s32.totalorder %s17, 1
      %p56 = por %p54, %p55
      %p57 = scmp.ne.s32.totalorder %s48, %s49
      %p58 = scmp.eq.s32.totalorder %s17, 0
      %p59 = por %p57, %p58
      %p60 = scmp.ne.s32.totalorder %s48, %s49
      %p61 = scmp.eq.s32.totalorder %s18, 1
      %p62 = por %p60, %p61
      %p64 = scmp.ne.s32.totalorder %s49, %s63
      %p65 = scmp.eq.s32.totalorder %s18, 0
      %p66 = por %p64, %p65
      %s68 = sadd.s32 %s67, 1
      %p71 = scmp.eq.s32.totalorder %s12, 1
      %p72 = scmp.ne.s32.totalorder %s67, %s69
      %p73 = scmp.eq.s32.totalorder %s12, 0
      %p74 = por %p72, %p73
      %p75 = scmp.ne.s32.totalorder %s67, %s69
      %p76 = scmp.eq.s32.totalorder %s17, 1
      %p77 = por %p75, %p76
      %p78 = scmp.ne.s32.totalorder %s69, %s70
      %p79 = scmp.eq.s32.totalorder %s17, 0
      %p80 = por %p78, %p79
      %p81 = scmp.ne.s32.totalorder %s69, %s70
      %p82 = scmp.eq.s32.totalorder %s18, 1
      %p83 = por %p81, %p82
      %p85 = scmp.ne.s32.totalorder %s70, %s84
      %p86 = scmp.eq.s32.totalorder %s18, 0
      %p87 = por %p85, %p86
      %s88 = ssub.s32 %s12, %s19
      %p89 = scmp.eq.s32.totalorder %s88, 0
      %s91 = sadd.s32 %s90, 1
      %s92 = scalar_select %p89, %s90, %s91
      %p95 = pneg %p89
      %p96 = scmp.eq.s32.totalorder %s12, 1
      %p97 = por %p95, %p96
      %p98 = scmp.ne.s32.totalorder %s90, %s93
      %p99 = scmp.eq.s32.totalorder %s12, 0
      %p100 = por %p98, %p99
      %p101 = scmp.ne.s32.totalorder %s90, %s93
      %p102 = scmp.eq.s32.totalorder %s17, 1
      %p103 = por %p101, %p102
      %p104 = scmp.ne.s32.totalorder %s93, %s94
      %p105 = scmp.eq.s32.totalorder %s17, 0
      %p106 = por %p104, %p105
      %p107 = scmp.ne.s32.totalorder %s93, %s94
      %p108 = scmp.eq.s32.totalorder %s18, 1
      %p109 = por %p107, %p108
      %p111 = scmp.ne.s32.totalorder %s94, %s110
      %p112 = scmp.eq.s32.totalorder %s18, 0
      %p113 = por %p111, %p112
      %p114 = scmp.le.s32.totalorder 1, %s12
      %p115 = scmp.lt.s32.totalorder %s12, 3
      %p116 = pnand %p114, %p115
      %p117 = pneg %p116
      // Predicated region
      $region9: #{tpu_custom_call.1} parent=5 // pred_check
        _
      $region10: #{tpu_custom_call.1} parent=5 // pred_check_branch
        %119 = sbr.rel (%p116) target = $region12
      $region11: #{tpu_custom_call.1} parent=5 // pred_region
        %s120 = ssub.s32 %s12, 1
        // Predicated region
        $region13: #{tpu_custom_call.1} parent=11 // pred_check
          %p121 = pneg %p59
        $region14: #{tpu_custom_call.1} parent=11 // pred_check_branch
          %123 = sbr.rel (%p121) target = $region16
        $region15: #{tpu_custom_call.1} parent=11 // pred_region
          _
        $region16: #{tpu_custom_call.1} parent=11 // pred_fallthru
          _
        // Predicated region
        $region17: #{tpu_custom_call.1} parent=11 // pred_check
          %p124 = pneg %p80
        $region18: #{tpu_custom_call.1} parent=11 // pred_check_branch
          %126 = sbr.rel (%p124) target = $region20
        $region19: #{tpu_custom_call.1} parent=11 // pred_region
          _
        $region20: #{tpu_custom_call.1} parent=11 // pred_fallthru
          _
      $region12: #{tpu_custom_call.1} parent=5 // pred_fallthru
        _
      %p127 = scmp.lt.s32.totalorder %s12, 2
      // Predicated region
      $region21: #{tpu_custom_call.1} parent=5 // pred_check
        %p128 = pneg %p127
      $region22: #{tpu_custom_call.1} parent=5 // pred_check_branch
        %130 = sbr.rel (%p128) target = $region24
      $region23: #{tpu_custom_call.1} parent=5 // pred_region
        // Predicated region
        $region25: #{tpu_custom_call.1} parent=23 // pred_check
          %p131 = pneg %p32
        $region26: #{tpu_custom_call.1} parent=23 // pred_check_branch
          %133 = sbr.rel (%p131) target = $region28
        $region27: #{tpu_custom_call.1} parent=23 // pred_region
          %p134 = scmp.lt.s32.totalorder %s12, 1
          %s135 = scalar_select %p134, %s12, 1
          %s136 = smul.addr %s135, 3
          %s137 = smul.addr %s136, 8
          %s138 = scalar_lea.vmem %s0, %s137
        $region28: #{tpu_custom_call.1} parent=23 // pred_fallthru
          _
      $region24: #{tpu_custom_call.1} parent=5 // pred_fallthru
        _
      %p139 = scmp.le.s32.totalorder 1, %s12
      %p140 = scmp.lt.s32.totalorder %s12, 3
      %p141 = pnand %p139, %p140
      %p142 = pneg %p141
      // Predicated region
      $region29: #{tpu_custom_call.1} parent=5 // pred_check
        _
      $region30: #{tpu_custom_call.1} parent=5 // pred_check_branch
        %144 = sbr.rel (%p141) target = $region32
      $region31: #{tpu_custom_call.1} parent=5 // pred_region
        %s145 = ssub.s32 %s12, 1
        %p146 = scmp.lt.s32.totalorder %s17, 1
        %s147 = scalar_select %p146, %s17, 1
        %s148 = smul.addr %s147, 3
        %s149 = smul.addr %s148, 8
        %s150 = scalar_lea.vmem %s0, %s149
        %p151 = pneg %p38
        %p152 = pneg %p35
        %p153 = pneg %p59
        %p154 = pneg %p56
        %p155 = pneg %p80
        %p156 = pneg %p77
        %p157 = pneg %p106
        %p158 = pneg %p103
        %s159 = sand.u32 %s93, 1
        %s160 = scalar_lea.sflag [#allocation3], %s159
        %s161 = sand.u32 %s93, 1
        %s162 = smul.addr %s161, 16
        %s163 = scalar_lea.vmem [#allocation2], %s162
        %p164 = scmp.lt.s32.totalorder %s17, 1
        %s165 = scalar_select %p164, %s17, 1
        %s166 = smul.addr %s165, 3
        %s167 = smul.addr %s166, 8
        %s168 = scalar_lea.vmem %s0, %s167
        %v169 = vld [vmem:[%s168] sm:$0xff]
        %v170 = vld [vmem:[%s168 + $0x8] sm:$0xff]
        %v171 = vld [vmem:[%s168 + $0x10] sm:$0x3]
        %v172 = vld [vmem:[%s2] sm:$0x1]
        %v174 = vlaneseq
        %v175 = vshrl.u32 %v174, 7
        %v176 = vsub.s32 0, %v175
        %v177 = vrot.slane %v172, %v176
        %182 = vrot.lane.b32.xlu0 %v169, 16
        %v183 = vpop.permute.xlu0 %182
        %184 = vrot.lane.b32.xlu0 %v170, 16
        %v185 = vpop.permute.xlu0 %184
        %186 = vrot.lane.b32.xlu0 %v171, 16
        %v187 = vpop.permute.xlu0 %186
        %191 = vrot.lane.b32.xlu0 %v169, 32
        %v192 = vpop.permute.xlu0 %191
        %193 = vrot.lane.b32.xlu0 %v170, 32
        %v194 = vpop.permute.xlu0 %193
        %195 = vrot.lane.b32.xlu0 %v171, 32
        %v196 = vpop.permute.xlu0 %195
        %200 = vrot.lane.b32.xlu0 %v169, 48
        %v201 = vpop.permute.xlu0 %200
        %202 = vrot.lane.b32.xlu0 %v170, 48
        %v203 = vpop.permute.xlu0 %202
        %204 = vrot.lane.b32.xlu0 %v171, 48
        %v205 = vpop.permute.xlu0 %204
        %209 = vrot.lane.b32.xlu0 %v169, 64
        %v210 = vpop.permute.xlu0 %209
        %211 = vrot.lane.b32.xlu0 %v170, 64
        %v212 = vpop.permute.xlu0 %211
        %213 = vrot.lane.b32.xlu0 %v171, 64
        %v214 = vpop.permute.xlu0 %213
        %218 = vrot.lane.b32.xlu0 %v169, 80
        %v219 = vpop.permute.xlu0 %218
        %220 = vrot.lane.b32.xlu0 %v170, 80
        %v221 = vpop.permute.xlu0 %220
        %222 = vrot.lane.b32.xlu0 %v171, 80
        %v223 = vpop.permute.xlu0 %222
        %227 = vrot.lane.b32.xlu0 %v169, 96
        %v228 = vpop.permute.xlu0 %227
        %229 = vrot.lane.b32.xlu0 %v170, 96
        %v230 = vpop.permute.xlu0 %229
        %231 = vrot.lane.b32.xlu0 %v171, 96
        %v232 = vpop.permute.xlu0 %231
        %236 = vrot.lane.b32.xlu0 %v169, 112
        %v237 = vpop.permute.xlu0 %236
        %238 = vrot.lane.b32.xlu0 %v170, 112
        %v239 = vpop.permute.xlu0 %238
        %240 = vrot.lane.b32.xlu0 %v171, 112
        %v241 = vpop.permute.xlu0 %240
        %vm245 = vcmask 130048
        %v246 = vsel %vm245, %v169, %v183
        %v247 = vsel %vm245, %v170, %v185
        %v248 = vsel %vm245, %v171, %v187
        %vm249 = vcmask 261120
        %v250 = vsel %vm249, %v246, %v192
        %v251 = vsel %vm249, %v247, %v194
        %v252 = vsel %vm249, %v248, %v196
        %vm253 = vcmask 392192
        %v254 = vsel %vm253, %v250, %v201
        %v255 = vsel %vm253, %v251, %v203
        %v256 = vsel %vm253, %v252, %v205
        %vm257 = vcmask 523264
        %v258 = vsel %vm257, %v254, %v210
        %v259 = vsel %vm257, %v255, %v212
        %v260 = vsel %vm257, %v256, %v214
        %vm261 = vcmask 654336
        %v262 = vsel %vm261, %v258, %v219
        %v263 = vsel %vm261, %v259, %v221
        %v264 = vsel %vm261, %v260, %v223
        %vm265 = vcmask 785408
        %v266 = vsel %vm265, %v262, %v228
        %v267 = vsel %vm265, %v263, %v230
        %v268 = vsel %vm265, %v264, %v232
        %vm269 = vcmask 916480
        %v270 = vsel %vm269, %v266, %v237
        %v271 = vsel %vm269, %v267, %v239
        %v272 = vsel %vm269, %v268, %v241
        %v273 = vld [vmem:[%s1] sm:$0x1]
        %v274 = vlaneseq
        %v275 = vshrl.u32 %v274, 7
        %v276 = vsub.s32 0, %v275
        %v277 = vrot.slane %v273, %v276
        %v278 = vmul.f32 %v277, %v270
        %v279 = vmul.f32 %v277, %v271
        %v280 = vadd.f32 %v177, %v278
        %v281 = vadd.f32 %v177, %v279
        %v282 = vld [vmem:[%s1 + $0x3] sm:$0x1]
        %v283 = vlaneseq
        %v284 = vshrl.u32 %v283, 7
        %v285 = vsub.s32 0, %v284
        %v286 = vrot.slane %v282, %v285
        %v287 = vmul.f32 %v286, %v270
        %v288 = vmul.f32 %v286, %v271
        %v289 = vmul.f32 %v286, %v272
        %vm293 = vcmask 1046528
        %v294 = vrot.slane %v287, 1
        %v295 = vrot.slane %v288, 1
        %v296 = vsel %vm293, %v294, %v295
        %v297 = vrot.slane %v289, 1
        %v298 = vsel %vm293, %v295, %v297
        %v301 = vadd.f32 %v280, %v296
        %v302 = vadd.f32 %v281, %v298
        %v303 = vld [vmem:[%s1 + $0x6] sm:$0x1]
        %v304 = vlaneseq
        %v305 = vshrl.u32 %v304, 7
        %v306 = vsub.s32 0, %v305
        %v307 = vrot.slane %v303, %v306
        %v308 = vmul.f32 %v307, %v270
        %v309 = vmul.f32 %v307, %v271
        %v310 = vmul.f32 %v307, %v272
        %vm314 = vcmask 1045504
        %v315 = vrot.slane %v308, 2
        %v316 = vrot.slane %v309, 2
        %v317 = vsel %vm314, %v315, %v316
        %v318 = vrot.slane %v310, 2
        %v319 = vsel %vm314, %v316, %v318
        %v322 = vadd.f32 %v301, %v317
        %v323 = vadd.f32 %v302, %v319
        %324 = vrot.lane.b32.xlu0 %v169, 127
        %v325 = vpop.permute.xlu0 %324
        %326 = vrot.lane.b32.xlu0 %v170, 127
        %v327 = vpop.permute.xlu0 %326
        %328 = vrot.lane.b32.xlu0 %v171, 127
        %v329 = vpop.permute.xlu0 %328
        %333 = vrot.lane.b32.xlu0 %v169, 15
        %v334 = vpop.permute.xlu0 %333
        %335 = vrot.lane.b32.xlu0 %v170, 15
        %v336 = vpop.permute.xlu0 %335
        %337 = vrot.lane.b32.xlu0 %v171, 15
        %v338 = vpop.permute.xlu0 %337
        %342 = vrot.lane.b32.xlu0 %v169, 31
        %v343 = vpop.permute.xlu0 %342
        %344 = vrot.lane.b32.xlu0 %v170, 31
        %v345 = vpop.permute.xlu0 %344
        %346 = vrot.lane.b32.xlu0 %v171, 31
        %v347 = vpop.permute.xlu0 %346
        %351 = vrot.lane.b32.xlu0 %v169, 47
        %v352 = vpop.permute.xlu0 %351
        %353 = vrot.lane.b32.xlu0 %v170, 47
        %v354 = vpop.permute.xlu0 %353
        %355 = vrot.lane.b32.xlu0 %v171, 47
        %v356 = vpop.permute.xlu0 %355
        %360 = vrot.lane.b32.xlu0 %v169, 63
        %v361 = vpop.permute.xlu0 %360
        %362 = vrot.lane.b32.xlu0 %v170, 63
        %v363 = vpop.permute.xlu0 %362
        %364 = vrot.lane.b32.xlu0 %v171, 63
        %v365 = vpop.permute.xlu0 %364
        %369 = vrot.lane.b32.xlu0 %v169, 79
        %v370 = vpop.permute.xlu0 %369
        %371 = vrot.lane.b32.xlu0 %v170, 79
        %v372 = vpop.permute.xlu0 %371
        %373 = vrot.lane.b32.xlu0 %v171, 79
        %v374 = vpop.permute.xlu0 %373
        %378 = vrot.lane.b32.xlu0 %v169, 95
        %v379 = vpop.permute.xlu0 %378
        %380 = vrot.lane.b32.xlu0 %v170, 95
        %v381 = vpop.permute.xlu0 %380
        %382 = vrot.lane.b32.xlu0 %v171, 95
        %v383 = vpop.permute.xlu0 %382
        %387 = vrot.lane.b32.xlu0 %v169, 111
        %v388 = vpop.permute.xlu0 %387
        %389 = vrot.lane.b32.xlu0 %v170, 111
        %v390 = vpop.permute.xlu0 %389
        %391 = vrot.lane.b32.xlu0 %v171, 111
        %v392 = vpop.permute.xlu0 %391
        %v396 = vsel %vm245, %v325, %v334
        %v397 = vsel %vm245, %v327, %v336
        %v398 = vsel %vm245, %v329, %v338
        %v399 = vsel %vm249, %v396, %v343
        %v400 = vsel %vm249, %v397, %v345
        %v401 = vsel %vm249, %v398, %v347
        %v402 = vsel %vm253, %v399, %v352
        %v403 = vsel %vm253, %v400, %v354
        %v404 = vsel %vm253, %v401, %v356
        %v405 = vsel %vm257, %v402, %v361
        %v406 = vsel %vm257, %v403, %v363
        %v407 = vsel %vm257, %v404, %v365
        %v408 = vsel %vm261, %v405, %v370
        %v409 = vsel %vm261, %v406, %v372
        %v410 = vsel %vm261, %v407, %v374
        %v411 = vsel %vm265, %v408, %v379
        %v412 = vsel %vm265, %v409, %v381
        %v413 = vsel %vm265, %v410, %v383
        %v414 = vsel %vm269, %v411, %v388
        %v415 = vsel %vm269, %v412, %v390
        %v416 = vsel %vm269, %v413, %v392
        %v417 = vld [vmem:[%s1 + $0x1] sm:$0x1]
        %v418 = vlaneseq
        %v419 = vshrl.u32 %v418, 7
        %v420 = vsub.s32 0, %v419
        %v421 = vrot.slane %v417, %v420
        %v422 = vmul.f32 %v421, %v414
        %v423 = vmul.f32 %v421, %v415
        %v424 = vadd.f32 %v322, %v422
        %v425 = vadd.f32 %v323, %v423
        %v426 = vld [vmem:[%s1 + $0x4] sm:$0x1]
        %v427 = vlaneseq
        %v428 = vshrl.u32 %v427, 7
        %v429 = vsub.s32 0, %v428
        %v430 = vrot.slane %v426, %v429
        %v431 = vmul.f32 %v430, %v414
        %v432 = vmul.f32 %v430, %v415
        %v433 = vmul.f32 %v430, %v416
        %v437 = vrot.slane %v431, 1
        %v438 = vrot.slane %v432, 1
        %v439 = vsel %vm293, %v437, %v438
        %v440 = vrot.slane %v433, 1
        %v441 = vsel %vm293, %v438, %v440
        %v444 = vadd.f32 %v424, %v439
        %v445 = vadd.f32 %v425, %v441
        %v446 = vld [vmem:[%s1 + $0x7] sm:$0x1]
        %v447 = vlaneseq
        %v448 = vshrl.u32 %v447, 7
        %v449 = vsub.s32 0, %v448
        %v450 = vrot.slane %v446, %v449
        %v451 = vmul.f32 %v450, %v414
        %v452 = vmul.f32 %v450, %v415
        %v453 = vmul.f32 %v450, %v416
        %v457 = vrot.slane %v451, 2
        %v458 = vrot.slane %v452, 2
        %v459 = vsel %vm314, %v457, %v458
        %v460 = vrot.slane %v453, 2
        %v461 = vsel %vm314, %v458, %v460
        %v464 = vadd.f32 %v444, %v459
        %v465 = vadd.f32 %v445, %v461
        %466 = vrot.lane.b32.xlu0 %v169, 126
        %v467 = vpop.permute.xlu0 %466
        %468 = vrot.lane.b32.xlu0 %v170, 126
        %v469 = vpop.permute.xlu0 %468
        %470 = vrot.lane.b32.xlu0 %v171, 126
        %v471 = vpop.permute.xlu0 %470
        %475 = vrot.lane.b32.xlu0 %v169, 14
        %v476 = vpop.permute.xlu0 %475
        %477 = vrot.lane.b32.xlu0 %v170, 14
        %v478 = vpop.permute.xlu0 %477
        %479 = vrot.lane.b32.xlu0 %v171, 14
        %v480 = vpop.permute.xlu0 %479
        %484 = vrot.lane.b32.xlu0 %v169, 30
        %v485 = vpop.permute.xlu0 %484
        %486 = vrot.lane.b32.xlu0 %v170, 30
        %v487 = vpop.permute.xlu0 %486
        %488 = vrot.lane.b32.xlu0 %v171, 30
        %v489 = vpop.permute.xlu0 %488
        %493 = vrot.lane.b32.xlu0 %v169, 46
        %v494 = vpop.permute.xlu0 %493
        %495 = vrot.lane.b32.xlu0 %v170, 46
        %v496 = vpop.permute.xlu0 %495
        %497 = vrot.lane.b32.xlu0 %v171, 46
        %v498 = vpop.permute.xlu0 %497
        %502 = vrot.lane.b32.xlu0 %v169, 62
        %v503 = vpop.permute.xlu0 %502
        %504 = vrot.lane.b32.xlu0 %v170, 62
        %v505 = vpop.permute.xlu0 %504
        %506 = vrot.lane.b32.xlu0 %v171, 62
        %v507 = vpop.permute.xlu0 %506
        %511 = vrot.lane.b32.xlu0 %v169, 78
        %v512 = vpop.permute.xlu0 %511
        %513 = vrot.lane.b32.xlu0 %v170, 78
        %v514 = vpop.permute.xlu0 %513
        %515 = vrot.lane.b32.xlu0 %v171, 78
        %v516 = vpop.permute.xlu0 %515
        %520 = vrot.lane.b32.xlu0 %v169, 94
        %v521 = vpop.permute.xlu0 %520
        %522 = vrot.lane.b32.xlu0 %v170, 94
        %v523 = vpop.permute.xlu0 %522
        %524 = vrot.lane.b32.xlu0 %v171, 94
        %v525 = vpop.permute.xlu0 %524
        %529 = vrot.lane.b32.xlu0 %v169, 110
        %v530 = vpop.permute.xlu0 %529
        %531 = vrot.lane.b32.xlu0 %v170, 110
        %v532 = vpop.permute.xlu0 %531
        %533 = vrot.lane.b32.xlu0 %v171, 110
        %v534 = vpop.permute.xlu0 %533
        %v538 = vsel %vm245, %v467, %v476
        %v539 = vsel %vm245, %v469, %v478
        %v540 = vsel %vm245, %v471, %v480
        %v541 = vsel %vm249, %v538, %v485
        %v542 = vsel %vm249, %v539, %v487
        %v543 = vsel %vm249, %v540, %v489
        %v544 = vsel %vm253, %v541, %v494
        %v545 = vsel %vm253, %v542, %v496
        %v546 = vsel %vm253, %v543, %v498
        %v547 = vsel %vm257, %v544, %v503
        %v548 = vsel %vm257, %v545, %v505
        %v549 = vsel %vm257, %v546, %v507
        %v550 = vsel %vm261, %v547, %v512
        %v551 = vsel %vm261, %v548, %v514
        %v552 = vsel %vm261, %v549, %v516
        %v553 = vsel %vm265, %v550, %v521
        %v554 = vsel %vm265, %v551, %v523
        %v555 = vsel %vm265, %v552, %v525
        %v556 = vsel %vm269, %v553, %v530
        %v557 = vsel %vm269, %v554, %v532
        %v558 = vsel %vm269, %v555, %v534
        %v559 = vld [vmem:[%s1 + $0x2] sm:$0x1]
        %v560 = vlaneseq
        %v561 = vshrl.u32 %v560, 7
        %v562 = vsub.s32 0, %v561
        %v563 = vrot.slane %v559, %v562
        %v564 = vmul.f32 %v563, %v556
        %v565 = vmul.f32 %v563, %v557
        %v566 = vadd.f32 %v464, %v564
        %v567 = vadd.f32 %v465, %v565
        %v568 = vld [vmem:[%s1 + $0x5] sm:$0x1]
        %v569 = vlaneseq
        %v570 = vshrl.u32 %v569, 7
        %v571 = vsub.s32 0, %v570
        %v572 = vrot.slane %v568, %v571
        %v573 = vmul.f32 %v572, %v556
        %v574 = vmul.f32 %v572, %v557
        %v575 = vmul.f32 %v572, %v558
        %v579 = vrot.slane %v573, 1
        %v580 = vrot.slane %v574, 1
        %v581 = vsel %vm293, %v579, %v580
        %v582 = vrot.slane %v575, 1
        %v583 = vsel %vm293, %v580, %v582
        %v586 = vadd.f32 %v566, %v581
        %v587 = vadd.f32 %v567, %v583
        %v588 = vld [vmem:[%s1 + $0x8] sm:$0x1]
        %v589 = vlaneseq
        %v590 = vshrl.u32 %v589, 7
        %v591 = vsub.s32 0, %v590
        %v592 = vrot.slane %v588, %v591
        %v593 = vmul.f32 %v592, %v556
        %v594 = vmul.f32 %v592, %v557
        %v595 = vmul.f32 %v592, %v558
        %v599 = vrot.slane %v593, 2
        %v600 = vrot.slane %v594, 2
        %v601 = vsel %vm314, %v599, %v600
        %v602 = vrot.slane %v595, 2
        %v603 = vsel %vm314, %v600, %v602
        %v606 = vadd.f32 %v586, %v601
        %v607 = vadd.f32 %v587, %v603
        %v608 = vsel %vm245, %v530, %v467
        %v609 = vsel %vm245, %v532, %v469
        %v610 = vsel %vm245, %v534, %v471
        %v611 = vsel %vm249, %v608, %v476
        %v612 = vsel %vm249, %v609, %v478
        %v613 = vsel %vm249, %v610, %v480
        %v614 = vsel %vm253, %v611, %v485
        %v615 = vsel %vm253, %v612, %v487
        %v616 = vsel %vm253, %v613, %v489
        %v617 = vsel %vm257, %v614, %v494
        %v618 = vsel %vm257, %v615, %v496
        %v619 = vsel %vm257, %v616, %v498
        %v620 = vsel %vm261, %v617, %v503
        %v621 = vsel %vm261, %v618, %v505
        %v622 = vsel %vm261, %v619, %v507
        %v623 = vsel %vm265, %v620, %v512
        %v624 = vsel %vm265, %v621, %v514
        %v625 = vsel %vm265, %v622, %v516
        %v626 = vsel %vm269, %v623, %v521
        %v627 = vsel %vm269, %v624, %v523
        %v628 = vsel %vm269, %v625, %v525
        %v629 = vld [vmem:[%s1 + $0x9] sm:$0x1]
        %v630 = vlaneseq
        %v631 = vshrl.u32 %v630, 7
        %v632 = vsub.s32 0, %v631
        %v633 = vrot.slane %v629, %v632
        %v634 = vmul.f32 %v633, %v626
        %v635 = vmul.f32 %v633, %v627
        %v636 = vadd.f32 %v606, %v634
        %v637 = vadd.f32 %v607, %v635
        %v638 = vld [vmem:[%s1 + $0xc] sm:$0x1]
        %v639 = vlaneseq
        %v640 = vshrl.u32 %v639, 7
        %v641 = vsub.s32 0, %v640
        %v642 = vrot.slane %v638, %v641
        %v643 = vmul.f32 %v642, %v626
        %v644 = vmul.f32 %v642, %v627
        %v645 = vmul.f32 %v642, %v628
        %v649 = vrot.slane %v643, 1
        %v650 = vrot.slane %v644, 1
        %v651 = vsel %vm293, %v649, %v650
        %v652 = vrot.slane %v645, 1
        %v653 = vsel %vm293, %v650, %v652
        %v656 = vadd.f32 %v636, %v651
        %v657 = vadd.f32 %v637, %v653
        %v658 = vld [vmem:[%s1 + $0xf] sm:$0x1]
        %v659 = vlaneseq
        %v660 = vshrl.u32 %v659, 7
        %v661 = vsub.s32 0, %v660
        %v662 = vrot.slane %v658, %v661
        %v663 = vmul.f32 %v662, %v626
        %v664 = vmul.f32 %v662, %v627
        %v665 = vmul.f32 %v662, %v628
        %v669 = vrot.slane %v663, 2
        %v670 = vrot.slane %v664, 2
        %v671 = vsel %vm314, %v669, %v670
        %v672 = vrot.slane %v665, 2
        %v673 = vsel %vm314, %v670, %v672
        %v676 = vadd.f32 %v656, %v671
        %v677 = vadd.f32 %v657, %v673
        %678 = vrot.lane.b32.xlu0 %v169, 109
        %v679 = vpop.permute.xlu0 %678
        %680 = vrot.lane.b32.xlu0 %v170, 109
        %v681 = vpop.permute.xlu0 %680
        %682 = vrot.lane.b32.xlu0 %v171, 109
        %v683 = vpop.permute.xlu0 %682
        %687 = vrot.lane.b32.xlu0 %v169, 125
        %v688 = vpop.permute.xlu0 %687
        %689 = vrot.lane.b32.xlu0 %v170, 125
        %v690 = vpop.permute.xlu0 %689
        %691 = vrot.lane.b32.xlu0 %v171, 125
        %v692 = vpop.permute.xlu0 %691
        %696 = vrot.lane.b32.xlu0 %v169, 13
        %v697 = vpop.permute.xlu0 %696
        %698 = vrot.lane.b32.xlu0 %v170, 13
        %v699 = vpop.permute.xlu0 %698
        %700 = vrot.lane.b32.xlu0 %v171, 13
        %v701 = vpop.permute.xlu0 %700
        %705 = vrot.lane.b32.xlu0 %v169, 29
        %v706 = vpop.permute.xlu0 %705
        %707 = vrot.lane.b32.xlu0 %v170, 29
        %v708 = vpop.permute.xlu0 %707
        %709 = vrot.lane.b32.xlu0 %v171, 29
        %v710 = vpop.permute.xlu0 %709
        %714 = vrot.lane.b32.xlu0 %v169, 45
        %v715 = vpop.permute.xlu0 %714
        %716 = vrot.lane.b32.xlu0 %v170, 45
        %v717 = vpop.permute.xlu0 %716
        %718 = vrot.lane.b32.xlu0 %v171, 45
        %v719 = vpop.permute.xlu0 %718
        %723 = vrot.lane.b32.xlu0 %v169, 61
        %v724 = vpop.permute.xlu0 %723
        %725 = vrot.lane.b32.xlu0 %v170, 61
        %v726 = vpop.permute.xlu0 %725
        %727 = vrot.lane.b32.xlu0 %v171, 61
        %v728 = vpop.permute.xlu0 %727
        %732 = vrot.lane.b32.xlu0 %v169, 77
        %v733 = vpop.permute.xlu0 %732
        %734 = vrot.lane.b32.xlu0 %v170, 77
        %v735 = vpop.permute.xlu0 %734
        %736 = vrot.lane.b32.xlu0 %v171, 77
        %v737 = vpop.permute.xlu0 %736
        %741 = vrot.lane.b32.xlu0 %v169, 93
        %v742 = vpop.permute.xlu0 %741
        %743 = vrot.lane.b32.xlu0 %v170, 93
        %v744 = vpop.permute.xlu0 %743
        %745 = vrot.lane.b32.xlu0 %v171, 93
        %v746 = vpop.permute.xlu0 %745
        %v750 = vsel %vm245, %v679, %v688
        %v751 = vsel %vm245, %v681, %v690
        %v752 = vsel %vm245, %v683, %v692
        %v753 = vsel %vm249, %v750, %v697
        %v754 = vsel %vm249, %v751, %v699
        %v755 = vsel %vm249, %v752, %v701
        %v756 = vsel %vm253, %v753, %v706
        %v757 = vsel %vm253, %v754, %v708
        %v758 = vsel %vm253, %v755, %v710
        %v759 = vsel %vm257, %v756, %v715
        %v760 = vsel %vm257, %v757, %v717
        %v761 = vsel %vm257, %v758, %v719
        %v762 = vsel %vm261, %v759, %v724
        %v763 = vsel %vm261, %v760, %v726
        %v764 = vsel %vm261, %v761, %v728
        %v765 = vsel %vm265, %v762, %v733
        %v766 = vsel %vm265, %v763, %v735
        %v767 = vsel %vm265, %v764, %v737
        %v768 = vsel %vm269, %v765, %v742
        %v769 = vsel %vm269, %v766, %v744
        %v770 = vsel %vm269, %v767, %v746
        %v771 = vld [vmem:[%s1 + $0xa] sm:$0x1]
        %v772 = vlaneseq
        %v773 = vshrl.u32 %v772, 7
        %v774 = vsub.s32 0, %v773
        %v775 = vrot.slane %v771, %v774
        %v776 = vmul.f32 %v775, %v768
        %v777 = vmul.f32 %v775, %v769
        %v778 = vadd.f32 %v676, %v776
        %v779 = vadd.f32 %v677, %v777
        %v780 = vld [vmem:[%s1 + $0xd] sm:$0x1]
        %v781 = vlaneseq
        %v782 = vshrl.u32 %v781, 7
        %v783 = vsub.s32 0, %v782
        %v784 = vrot.slane %v780, %v783
        %v785 = vmul.f32 %v784, %v768
        %v786 = vmul.f32 %v784, %v769
        %v787 = vmul.f32 %v784, %v770
        %v791 = vrot.slane %v785, 1
        %v792 = vrot.slane %v786, 1
        %v793 = vsel %vm293, %v791, %v792
        %v794 = vrot.slane %v787, 1
        %v795 = vsel %vm293, %v792, %v794
        %v798 = vadd.f32 %v778, %v793
        %v799 = vadd.f32 %v779, %v795
        %v800 = vld [vmem:[%s1 + $0x10] sm:$0x1]
        %v801 = vlaneseq
        %v802 = vshrl.u32 %v801, 7
        %v803 = vsub.s32 0, %v802
        %v804 = vrot.slane %v800, %v803
        %v805 = vmul.f32 %v804, %v768
        %v806 = vmul.f32 %v804, %v769
        %v807 = vmul.f32 %v804, %v770
        %v811 = vrot.slane %v805, 2
        %v812 = vrot.slane %v806, 2
        %v813 = vsel %vm314, %v811, %v812
        %v814 = vrot.slane %v807, 2
        %v815 = vsel %vm314, %v812, %v814
        %v818 = vadd.f32 %v798, %v813
        %v819 = vadd.f32 %v799, %v815
        %820 = vrot.lane.b32.xlu0 %v169, 108
        %v821 = vpop.permute.xlu0 %820
        %822 = vrot.lane.b32.xlu0 %v170, 108
        %v823 = vpop.permute.xlu0 %822
        %824 = vrot.lane.b32.xlu0 %v171, 108
        %v825 = vpop.permute.xlu0 %824
        %829 = vrot.lane.b32.xlu0 %v169, 124
        %v830 = vpop.permute.xlu0 %829
        %831 = vrot.lane.b32.xlu0 %v170, 124
        %v832 = vpop.permute.xlu0 %831
        %833 = vrot.lane.b32.xlu0 %v171, 124
        %v834 = vpop.permute.xlu0 %833
        %838 = vrot.lane.b32.xlu0 %v169, 12
        %v839 = vpop.permute.xlu0 %838
        %840 = vrot.lane.b32.xlu0 %v170, 12
        %v841 = vpop.permute.xlu0 %840
        %842 = vrot.lane.b32.xlu0 %v171, 12
        %v843 = vpop.permute.xlu0 %842
        %847 = vrot.lane.b32.xlu0 %v169, 28
        %v848 = vpop.permute.xlu0 %847
        %849 = vrot.lane.b32.xlu0 %v170, 28
        %v850 = vpop.permute.xlu0 %849
        %851 = vrot.lane.b32.xlu0 %v171, 28
        %v852 = vpop.permute.xlu0 %851
        %856 = vrot.lane.b32.xlu0 %v169, 44
        %v857 = vpop.permute.xlu0 %856
        %858 = vrot.lane.b32.xlu0 %v170, 44
        %v859 = vpop.permute.xlu0 %858
        %860 = vrot.lane.b32.xlu0 %v171, 44
        %v861 = vpop.permute.xlu0 %860
        %865 = vrot.lane.b32.xlu0 %v169, 60
        %v866 = vpop.permute.xlu0 %865
        %867 = vrot.lane.b32.xlu0 %v170, 60
        %v868 = vpop.permute.xlu0 %867
        %869 = vrot.lane.b32.xlu0 %v171, 60
        %v870 = vpop.permute.xlu0 %869
        %874 = vrot.lane.b32.xlu0 %v169, 76
        %v875 = vpop.permute.xlu0 %874
        %876 = vrot.lane.b32.xlu0 %v170, 76
        %v877 = vpop.permute.xlu0 %876
        %878 = vrot.lane.b32.xlu0 %v171, 76
        %v879 = vpop.permute.xlu0 %878
        %883 = vrot.lane.b32.xlu0 %v169, 92
        %v884 = vpop.permute.xlu0 %883
        %885 = vrot.lane.b32.xlu0 %v170, 92
        %v886 = vpop.permute.xlu0 %885
        %887 = vrot.lane.b32.xlu0 %v171, 92
        %v888 = vpop.permute.xlu0 %887
        %v892 = vsel %vm245, %v821, %v830
        %v893 = vsel %vm245, %v823, %v832
        %v894 = vsel %vm245, %v825, %v834
        %v895 = vsel %vm249, %v892, %v839
        %v896 = vsel %vm249, %v893, %v841
        %v897 = vsel %vm249, %v894, %v843
        %v898 = vsel %vm253, %v895, %v848
        %v899 = vsel %vm253, %v896, %v850
        %v900 = vsel %vm253, %v897, %v852
        %v901 = vsel %vm257, %v898, %v857
        %v902 = vsel %vm257, %v899, %v859
        %v903 = vsel %vm257, %v900, %v861
        %v904 = vsel %vm261, %v901, %v866
        %v905 = vsel %vm261, %v902, %v868
        %v906 = vsel %vm261, %v903, %v870
        %v907 = vsel %vm265, %v904, %v875
        %v908 = vsel %vm265, %v905, %v877
        %v909 = vsel %vm265, %v906, %v879
        %v910 = vsel %vm269, %v907, %v884
        %v911 = vsel %vm269, %v908, %v886
        %v912 = vsel %vm269, %v909, %v888
        %v913 = vld [vmem:[%s1 + $0xb] sm:$0x1]
        %v914 = vlaneseq
        %v915 = vshrl.u32 %v914, 7
        %v916 = vsub.s32 0, %v915
        %v917 = vrot.slane %v913, %v916
        %v918 = vmul.f32 %v917, %v910
        %v919 = vmul.f32 %v917, %v911
        %v920 = vadd.f32 %v818, %v918
        %v921 = vadd.f32 %v819, %v919
        %v922 = vld [vmem:[%s1 + $0xe] sm:$0x1]
        %v923 = vlaneseq
        %v924 = vshrl.u32 %v923, 7
        %v925 = vsub.s32 0, %v924
        %v926 = vrot.slane %v922, %v925
        %v927 = vmul.f32 %v926, %v910
        %v928 = vmul.f32 %v926, %v911
        %v929 = vmul.f32 %v926, %v912
        %v933 = vrot.slane %v927, 1
        %v934 = vrot.slane %v928, 1
        %v935 = vsel %vm293, %v933, %v934
        %v936 = vrot.slane %v929, 1
        %v937 = vsel %vm293, %v934, %v936
        %v940 = vadd.f32 %v920, %v935
        %v941 = vadd.f32 %v921, %v937
        %v942 = vld [vmem:[%s1 + $0x11] sm:$0x1]
        %v943 = vlaneseq
        %v944 = vshrl.u32 %v943, 7
        %v945 = vsub.s32 0, %v944
        %v946 = vrot.slane %v942, %v945
        %v947 = vmul.f32 %v946, %v910
        %v948 = vmul.f32 %v946, %v911
        %v949 = vmul.f32 %v946, %v912
        %v953 = vrot.slane %v947, 2
        %v954 = vrot.slane %v948, 2
        %v955 = vsel %vm314, %v953, %v954
        %v956 = vrot.slane %v949, 2
        %v957 = vsel %vm314, %v954, %v956
        %v960 = vadd.f32 %v940, %v955
        %v961 = vadd.f32 %v941, %v957
        %v962 = vsel %vm245, %v884, %v821
        %v963 = vsel %vm245, %v886, %v823
        %v964 = vsel %vm245, %v888, %v825
        %v965 = vsel %vm249, %v962, %v830
        %v966 = vsel %vm249, %v963, %v832
        %v967 = vsel %vm249, %v964, %v834
        %v968 = vsel %vm253, %v965, %v839
        %v969 = vsel %vm253, %v966, %v841
        %v970 = vsel %vm253, %v967, %v843
        %v971 = vsel %vm257, %v968, %v848
        %v972 = vsel %vm257, %v969, %v850
        %v973 = vsel %vm257, %v970, %v852
        %v974 = vsel %vm261, %v971, %v857
        %v975 = vsel %vm261, %v972, %v859
        %v976 = vsel %vm261, %v973, %v861
        %v977 = vsel %vm265, %v974, %v866
        %v978 = vsel %vm265, %v975, %v868
        %v979 = vsel %vm265, %v976, %v870
        %v980 = vsel %vm269, %v977, %v875
        %v981 = vsel %vm269, %v978, %v877
        %v982 = vsel %vm269, %v979, %v879
        %v983 = vld [vmem:[%s1 + $0x12] sm:$0x1]
        %v984 = vlaneseq
        %v985 = vshrl.u32 %v984, 7
        %v986 = vsub.s32 0, %v985
        %v987 = vrot.slane %v983, %v986
        %v988 = vmul.f32 %v987, %v980
        %v989 = vmul.f32 %v987, %v981
        %v990 = vadd.f32 %v960, %v988
        %v991 = vadd.f32 %v961, %v989
        %v992 = vld [vmem:[%s1 + $0x15] sm:$0x1]
        %v993 = vlaneseq
        %v994 = vshrl.u32 %v993, 7
        %v995 = vsub.s32 0, %v994
        %v996 = vrot.slane %v992, %v995
        %v997 = vmul.f32 %v996, %v980
        %v998 = vmul.f32 %v996, %v981
        %v999 = vmul.f32 %v996, %v982
        %v1003 = vrot.slane %v997, 1
        %v1004 = vrot.slane %v998, 1
        %v1005 = vsel %vm293, %v1003, %v1004
        %v1006 = vrot.slane %v999, 1
        %v1007 = vsel %vm293, %v1004, %v1006
        %v1010 = vadd.f32 %v990, %v1005
        %v1011 = vadd.f32 %v991, %v1007
        %v1012 = vld [vmem:[%s1 + $0x18] sm:$0x1]
        %v1013 = vlaneseq
        %v1014 = vshrl.u32 %v1013, 7
        %v1015 = vsub.s32 0, %v1014
        %v1016 = vrot.slane %v1012, %v1015
        %v1017 = vmul.f32 %v1016, %v980
        %v1018 = vmul.f32 %v1016, %v981
        %v1019 = vmul.f32 %v1016, %v982
        %v1023 = vrot.slane %v1017, 2
        %v1024 = vrot.slane %v1018, 2
        %v1025 = vsel %vm314, %v1023, %v1024
        %v1026 = vrot.slane %v1019, 2
        %v1027 = vsel %vm314, %v1024, %v1026
        %v1030 = vadd.f32 %v1010, %v1025
        %v1031 = vadd.f32 %v1011, %v1027
        %1032 = vrot.lane.b32.xlu0 %v169, 91
        %v1033 = vpop.permute.xlu0 %1032
        %1034 = vrot.lane.b32.xlu0 %v170, 91
        %v1035 = vpop.permute.xlu0 %1034
        %1036 = vrot.lane.b32.xlu0 %v171, 91
        %v1037 = vpop.permute.xlu0 %1036
        %1041 = vrot.lane.b32.xlu0 %v169, 107
        %v1042 = vpop.permute.xlu0 %1041
        %1043 = vrot.lane.b32.xlu0 %v170, 107
        %v1044 = vpop.permute.xlu0 %1043
        %1045 = vrot.lane.b32.xlu0 %v171, 107
        %v1046 = vpop.permute.xlu0 %1045
        %1050 = vrot.lane.b32.xlu0 %v169, 123
        %v1051 = vpop.permute.xlu0 %1050
        %1052 = vrot.lane.b32.xlu0 %v170, 123
        %v1053 = vpop.permute.xlu0 %1052
        %1054 = vrot.lane.b32.xlu0 %v171, 123
        %v1055 = vpop.permute.xlu0 %1054
        %1059 = vrot.lane.b32.xlu0 %v169, 11
        %v1060 = vpop.permute.xlu0 %1059
        %1061 = vrot.lane.b32.xlu0 %v170, 11
        %v1062 = vpop.permute.xlu0 %1061
        %1063 = vrot.lane.b32.xlu0 %v171, 11
        %v1064 = vpop.permute.xlu0 %1063
        %1068 = vrot.lane.b32.xlu0 %v169, 27
        %v1069 = vpop.permute.xlu0 %1068
        %1070 = vrot.lane.b32.xlu0 %v170, 27
        %v1071 = vpop.permute.xlu0 %1070
        %1072 = vrot.lane.b32.xlu0 %v171, 27
        %v1073 = vpop.permute.xlu0 %1072
        %1077 = vrot.lane.b32.xlu0 %v169, 43
        %v1078 = vpop.permute.xlu0 %1077
        %1079 = vrot.lane.b32.xlu0 %v170, 43
        %v1080 = vpop.permute.xlu0 %1079
        %1081 = vrot.lane.b32.xlu0 %v171, 43
        %v1082 = vpop.permute.xlu0 %1081
        %1086 = vrot.lane.b32.xlu0 %v169, 59
        %v1087 = vpop.permute.xlu0 %1086
        %1088 = vrot.lane.b32.xlu0 %v170, 59
        %v1089 = vpop.permute.xlu0 %1088
        %1090 = vrot.lane.b32.xlu0 %v171, 59
        %v1091 = vpop.permute.xlu0 %1090
        %1095 = vrot.lane.b32.xlu0 %v169, 75
        %v1096 = vpop.permute.xlu0 %1095
        %1097 = vrot.lane.b32.xlu0 %v170, 75
        %v1098 = vpop.permute.xlu0 %1097
        %1099 = vrot.lane.b32.xlu0 %v171, 75
        %v1100 = vpop.permute.xlu0 %1099
        %v1104 = vsel %vm245, %v1033, %v1042
        %v1105 = vsel %vm245, %v1035, %v1044
        %v1106 = vsel %vm245, %v1037, %v1046
        %v1107 = vsel %vm249, %v1104, %v1051
        %v1108 = vsel %vm249, %v1105, %v1053
        %v1109 = vsel %vm249, %v1106, %v1055
        %v1110 = vsel %vm253, %v1107, %v1060
        %v1111 = vsel %vm253, %v1108, %v1062
        %v1112 = vsel %vm253, %v1109, %v1064
        %v1113 = vsel %vm257, %v1110, %v1069
        %v1114 = vsel %vm257, %v1111, %v1071
        %v1115 = vsel %vm257, %v1112, %v1073
        %v1116 = vsel %vm261, %v1113, %v1078
        %v1117 = vsel %vm261, %v1114, %v1080
        %v1118 = vsel %vm261, %v1115, %v1082
        %v1119 = vsel %vm265, %v1116, %v1087
        %v1120 = vsel %vm265, %v1117, %v1089
        %v1121 = vsel %vm265, %v1118, %v1091
        %v1122 = vsel %vm269, %v1119, %v1096
        %v1123 = vsel %vm269, %v1120, %v1098
        %v1124 = vsel %vm269, %v1121, %v1100
        %v1125 = vld [vmem:[%s1 + $0x13] sm:$0x1]
        %v1126 = vlaneseq
        %v1127 = vshrl.u32 %v1126, 7
        %v1128 = vsub.s32 0, %v1127
        %v1129 = vrot.slane %v1125, %v1128
        %v1130 = vmul.f32 %v1129, %v1122
        %v1131 = vmul.f32 %v1129, %v1123
        %v1132 = vadd.f32 %v1030, %v1130
        %v1133 = vadd.f32 %v1031, %v1131
        %v1134 = vld [vmem:[%s1 + $0x16] sm:$0x1]
        %v1135 = vlaneseq
        %v1136 = vshrl.u32 %v1135, 7
        %v1137 = vsub.s32 0, %v1136
        %v1138 = vrot.slane %v1134, %v1137
        %v1139 = vmul.f32 %v1138, %v1122
        %v1140 = vmul.f32 %v1138, %v1123
        %v1141 = vmul.f32 %v1138, %v1124
        %v1145 = vrot.slane %v1139, 1
        %v1146 = vrot.slane %v1140, 1
        %v1147 = vsel %vm293, %v1145, %v1146
        %v1148 = vrot.slane %v1141, 1
        %v1149 = vsel %vm293, %v1146, %v1148
        %v1152 = vadd.f32 %v1132, %v1147
        %v1153 = vadd.f32 %v1133, %v1149
        %v1154 = vld [vmem:[%s1 + $0x19] sm:$0x1]
        %v1155 = vlaneseq
        %v1156 = vshrl.u32 %v1155, 7
        %v1157 = vsub.s32 0, %v1156
        %v1158 = vrot.slane %v1154, %v1157
        %v1159 = vmul.f32 %v1158, %v1122
        %v1160 = vmul.f32 %v1158, %v1123
        %v1161 = vmul.f32 %v1158, %v1124
        %v1165 = vrot.slane %v1159, 2
        %v1166 = vrot.slane %v1160, 2
        %v1167 = vsel %vm314, %v1165, %v1166
        %v1168 = vrot.slane %v1161, 2
        %v1169 = vsel %vm314, %v1166, %v1168
        %v1172 = vadd.f32 %v1152, %v1167
        %v1173 = vadd.f32 %v1153, %v1169
        %1174 = vrot.lane.b32.xlu0 %v169, 90
        %v1175 = vpop.permute.xlu0 %1174
        %1176 = vrot.lane.b32.xlu0 %v170, 90
        %v1177 = vpop.permute.xlu0 %1176
        %1178 = vrot.lane.b32.xlu0 %v171, 90
        %v1179 = vpop.permute.xlu0 %1178
        %1183 = vrot.lane.b32.xlu0 %v169, 106
        %v1184 = vpop.permute.xlu0 %1183
        %1185 = vrot.lane.b32.xlu0 %v170, 106
        %v1186 = vpop.permute.xlu0 %1185
        %1187 = vrot.lane.b32.xlu0 %v171, 106
        %v1188 = vpop.permute.xlu0 %1187
        %1192 = vrot.lane.b32.xlu0 %v169, 122
        %v1193 = vpop.permute.xlu0 %1192
        %1194 = vrot.lane.b32.xlu0 %v170, 122
        %v1195 = vpop.permute.xlu0 %1194
        %1196 = vrot.lane.b32.xlu0 %v171, 122
        %v1197 = vpop.permute.xlu0 %1196
        %1201 = vrot.lane.b32.xlu0 %v169, 10
        %v1202 = vpop.permute.xlu0 %1201
        %1203 = vrot.lane.b32.xlu0 %v170, 10
        %v1204 = vpop.permute.xlu0 %1203
        %1205 = vrot.lane.b32.xlu0 %v171, 10
        %v1206 = vpop.permute.xlu0 %1205
        %1210 = vrot.lane.b32.xlu0 %v169, 26
        %v1211 = vpop.permute.xlu0 %1210
        %1212 = vrot.lane.b32.xlu0 %v170, 26
        %v1213 = vpop.permute.xlu0 %1212
        %1214 = vrot.lane.b32.xlu0 %v171, 26
        %v1215 = vpop.permute.xlu0 %1214
        %1219 = vrot.lane.b32.xlu0 %v169, 42
        %v1220 = vpop.permute.xlu0 %1219
        %1221 = vrot.lane.b32.xlu0 %v170, 42
        %v1222 = vpop.permute.xlu0 %1221
        %1223 = vrot.lane.b32.xlu0 %v171, 42
        %v1224 = vpop.permute.xlu0 %1223
        %1228 = vrot.lane.b32.xlu0 %v169, 58
        %v1229 = vpop.permute.xlu0 %1228
        %1230 = vrot.lane.b32.xlu0 %v170, 58
        %v1231 = vpop.permute.xlu0 %1230
        %1232 = vrot.lane.b32.xlu0 %v171, 58
        %v1233 = vpop.permute.xlu0 %1232
        %1237 = vrot.lane.b32.xlu0 %v169, 74
        %v1238 = vpop.permute.xlu0 %1237
        %1239 = vrot.lane.b32.xlu0 %v170, 74
        %v1240 = vpop.permute.xlu0 %1239
        %1241 = vrot.lane.b32.xlu0 %v171, 74
        %v1242 = vpop.permute.xlu0 %1241
        %v1246 = vsel %vm245, %v1175, %v1184
        %v1247 = vsel %vm245, %v1177, %v1186
        %v1248 = vsel %vm245, %v1179, %v1188
        %v1249 = vsel %vm249, %v1246, %v1193
        %v1250 = vsel %vm249, %v1247, %v1195
        %v1251 = vsel %vm249, %v1248, %v1197
        %v1252 = vsel %vm253, %v1249, %v1202
        %v1253 = vsel %vm253, %v1250, %v1204
        %v1254 = vsel %vm253, %v1251, %v1206
        %v1255 = vsel %vm257, %v1252, %v1211
        %v1256 = vsel %vm257, %v1253, %v1213
        %v1257 = vsel %vm257, %v1254, %v1215
        %v1258 = vsel %vm261, %v1255, %v1220
        %v1259 = vsel %vm261, %v1256, %v1222
        %v1260 = vsel %vm261, %v1257, %v1224
        %v1261 = vsel %vm265, %v1258, %v1229
        %v1262 = vsel %vm265, %v1259, %v1231
        %v1263 = vsel %vm265, %v1260, %v1233
        %v1264 = vsel %vm269, %v1261, %v1238
        %v1265 = vsel %vm269, %v1262, %v1240
        %v1266 = vsel %vm269, %v1263, %v1242
        %v1267 = vld [vmem:[%s1 + $0x14] sm:$0x1]
        %v1268 = vlaneseq
        %v1269 = vshrl.u32 %v1268, 7
        %v1270 = vsub.s32 0, %v1269
        %v1271 = vrot.slane %v1267, %v1270
        %v1272 = vmul.f32 %v1271, %v1264
        %v1273 = vmul.f32 %v1271, %v1265
        %v1274 = vadd.f32 %v1172, %v1272
        %v1275 = vadd.f32 %v1173, %v1273
        %v1276 = vld [vmem:[%s1 + $0x17] sm:$0x1]
        %v1277 = vlaneseq
        %v1278 = vshrl.u32 %v1277, 7
        %v1279 = vsub.s32 0, %v1278
        %v1280 = vrot.slane %v1276, %v1279
        %v1281 = vmul.f32 %v1280, %v1264
        %v1282 = vmul.f32 %v1280, %v1265
        %v1283 = vmul.f32 %v1280, %v1266
        %v1287 = vrot.slane %v1281, 1
        %v1288 = vrot.slane %v1282, 1
        %v1289 = vsel %vm293, %v1287, %v1288
        %v1290 = vrot.slane %v1283, 1
        %v1291 = vsel %vm293, %v1288, %v1290
        %v1294 = vadd.f32 %v1274, %v1289
        %v1295 = vadd.f32 %v1275, %v1291
        %v1296 = vld [vmem:[%s1 + $0x1a] sm:$0x1]
        %v1297 = vlaneseq
        %v1298 = vshrl.u32 %v1297, 7
        %v1299 = vsub.s32 0, %v1298
        %v1300 = vrot.slane %v1296, %v1299
        %v1301 = vmul.f32 %v1300, %v1264
        %v1302 = vmul.f32 %v1300, %v1265
        %v1303 = vmul.f32 %v1300, %v1266
        %v1307 = vrot.slane %v1301, 2
        %v1308 = vrot.slane %v1302, 2
        %v1309 = vsel %vm314, %v1307, %v1308
        %v1310 = vrot.slane %v1303, 2
        %v1311 = vsel %vm314, %v1308, %v1310
        %v1314 = vadd.f32 %v1294, %v1309
        %v1315 = vadd.f32 %v1295, %v1311
        %v1316 = vsel %vm245, %v1238, %v1175
        %v1317 = vsel %vm245, %v1240, %v1177
        %v1318 = vsel %vm245, %v1242, %v1179
        %v1319 = vsel %vm249, %v1316, %v1184
        %v1320 = vsel %vm249, %v1317, %v1186
        %v1321 = vsel %vm249, %v1318, %v1188
        %v1322 = vsel %vm253, %v1319, %v1193
        %v1323 = vsel %vm253, %v1320, %v1195
        %v1324 = vsel %vm253, %v1321, %v1197
        %v1325 = vsel %vm257, %v1322, %v1202
        %v1326 = vsel %vm257, %v1323, %v1204
        %v1327 = vsel %vm257, %v1324, %v1206
        %v1328 = vsel %vm261, %v1325, %v1211
        %v1329 = vsel %vm261, %v1326, %v1213
        %v1330 = vsel %vm261, %v1327, %v1215
        %v1331 = vsel %vm265, %v1328, %v1220
        %v1332 = vsel %vm265, %v1329, %v1222
        %v1333 = vsel %vm265, %v1330, %v1224
        %v1334 = vsel %vm269, %v1331, %v1229
        %v1335 = vsel %vm269, %v1332, %v1231
        %v1336 = vsel %vm269, %v1333, %v1233
        %v1337 = vld [vmem:[%s1 + $0x1b] sm:$0x1]
        %v1338 = vlaneseq
        %v1339 = vshrl.u32 %v1338, 7
        %v1340 = vsub.s32 0, %v1339
        %v1341 = vrot.slane %v1337, %v1340
        %v1342 = vmul.f32 %v1341, %v1334
        %v1343 = vmul.f32 %v1341, %v1335
        %v1344 = vadd.f32 %v1314, %v1342
        %v1345 = vadd.f32 %v1315, %v1343
        %v1346 = vld [vmem:[%s1 + $0x1e] sm:$0x1]
        %v1347 = vlaneseq
        %v1348 = vshrl.u32 %v1347, 7
        %v1349 = vsub.s32 0, %v1348
        %v1350 = vrot.slane %v1346, %v1349
        %v1351 = vmul.f32 %v1350, %v1334
        %v1352 = vmul.f32 %v1350, %v1335
        %v1353 = vmul.f32 %v1350, %v1336
        %v1357 = vrot.slane %v1351, 1
        %v1358 = vrot.slane %v1352, 1
        %v1359 = vsel %vm293, %v1357, %v1358
        %v1360 = vrot.slane %v1353, 1
        %v1361 = vsel %vm293, %v1358, %v1360
        %v1364 = vadd.f32 %v1344, %v1359
        %v1365 = vadd.f32 %v1345, %v1361
        %v1366 = vld [vmem:[%s1 + $0x21] sm:$0x1]
        %v1367 = vlaneseq
        %v1368 = vshrl.u32 %v1367, 7
        %v1369 = vsub.s32 0, %v1368
        %v1370 = vrot.slane %v1366, %v1369
        %v1371 = vmul.f32 %v1370, %v1334
        %v1372 = vmul.f32 %v1370, %v1335
        %v1373 = vmul.f32 %v1370, %v1336
        %v1377 = vrot.slane %v1371, 2
        %v1378 = vrot.slane %v1372, 2
        %v1379 = vsel %vm314, %v1377, %v1378
        %v1380 = vrot.slane %v1373, 2
        %v1381 = vsel %vm314, %v1378, %v1380
        %v1384 = vadd.f32 %v1364, %v1379
        %v1385 = vadd.f32 %v1365, %v1381
        %1386 = vrot.lane.b32.xlu0 %v169, 73
        %v1387 = vpop.permute.xlu0 %1386
        %1388 = vrot.lane.b32.xlu0 %v170, 73
        %v1389 = vpop.permute.xlu0 %1388
        %1390 = vrot.lane.b32.xlu0 %v171, 73
        %v1391 = vpop.permute.xlu0 %1390
        %1395 = vrot.lane.b32.xlu0 %v169, 89
        %v1396 = vpop.permute.xlu0 %1395
        %1397 = vrot.lane.b32.xlu0 %v170, 89
        %v1398 = vpop.permute.xlu0 %1397
        %1399 = vrot.lane.b32.xlu0 %v171, 89
        %v1400 = vpop.permute.xlu0 %1399
        %1404 = vrot.lane.b32.xlu0 %v169, 105
        %v1405 = vpop.permute.xlu0 %1404
        %1406 = vrot.lane.b32.xlu0 %v170, 105
        %v1407 = vpop.permute.xlu0 %1406
        %1408 = vrot.lane.b32.xlu0 %v171, 105
        %v1409 = vpop.permute.xlu0 %1408
        %1413 = vrot.lane.b32.xlu0 %v169, 121
        %v1414 = vpop.permute.xlu0 %1413
        %1415 = vrot.lane.b32.xlu0 %v170, 121
        %v1416 = vpop.permute.xlu0 %1415
        %1417 = vrot.lane.b32.xlu0 %v171, 121
        %v1418 = vpop.permute.xlu0 %1417
        %1422 = vrot.lane.b32.xlu0 %v169, 9
        %v1423 = vpop.permute.xlu0 %1422
        %1424 = vrot.lane.b32.xlu0 %v170, 9
        %v1425 = vpop.permute.xlu0 %1424
        %1426 = vrot.lane.b32.xlu0 %v171, 9
        %v1427 = vpop.permute.xlu0 %1426
        %1431 = vrot.lane.b32.xlu0 %v169, 25
        %v1432 = vpop.permute.xlu0 %1431
        %1433 = vrot.lane.b32.xlu0 %v170, 25
        %v1434 = vpop.permute.xlu0 %1433
        %1435 = vrot.lane.b32.xlu0 %v171, 25
        %v1436 = vpop.permute.xlu0 %1435
        %1440 = vrot.lane.b32.xlu0 %v169, 41
        %v1441 = vpop.permute.xlu0 %1440
        %1442 = vrot.lane.b32.xlu0 %v170, 41
        %v1443 = vpop.permute.xlu0 %1442
        %1444 = vrot.lane.b32.xlu0 %v171, 41
        %v1445 = vpop.permute.xlu0 %1444
        %1449 = vrot.lane.b32.xlu0 %v169, 57
        %v1450 = vpop.permute.xlu0 %1449
        %1451 = vrot.lane.b32.xlu0 %v170, 57
        %v1452 = vpop.permute.xlu0 %1451
        %1453 = vrot.lane.b32.xlu0 %v171, 57
        %v1454 = vpop.permute.xlu0 %1453
        %v1458 = vsel %vm245, %v1387, %v1396
        %v1459 = vsel %vm245, %v1389, %v1398
        %v1460 = vsel %vm245, %v1391, %v1400
        %v1461 = vsel %vm249, %v1458, %v1405
        %v1462 = vsel %vm249, %v1459, %v1407
        %v1463 = vsel %vm249, %v1460, %v1409
        %v1464 = vsel %vm253, %v1461, %v1414
        %v1465 = vsel %vm253, %v1462, %v1416
        %v1466 = vsel %vm253, %v1463, %v1418
        %v1467 = vsel %vm257, %v1464, %v1423
        %v1468 = vsel %vm257, %v1465, %v1425
        %v1469 = vsel %vm257, %v1466, %v1427
        %v1470 = vsel %vm261, %v1467, %v1432
        %v1471 = vsel %vm261, %v1468, %v1434
        %v1472 = vsel %vm261, %v1469, %v1436
        %v1473 = vsel %vm265, %v1470, %v1441
        %v1474 = vsel %vm265, %v1471, %v1443
        %v1475 = vsel %vm265, %v1472, %v1445
        %v1476 = vsel %vm269, %v1473, %v1450
        %v1477 = vsel %vm269, %v1474, %v1452
        %v1478 = vsel %vm269, %v1475, %v1454
        %v1479 = vld [vmem:[%s1 + $0x1c] sm:$0x1]
        %v1480 = vlaneseq
        %v1481 = vshrl.u32 %v1480, 7
        %v1482 = vsub.s32 0, %v1481
        %v1483 = vrot.slane %v1479, %v1482
        %v1484 = vmul.f32 %v1483, %v1476
        %v1485 = vmul.f32 %v1483, %v1477
        %v1486 = vadd.f32 %v1384, %v1484
        %v1487 = vadd.f32 %v1385, %v1485
        %v1488 = vld [vmem:[%s1 + $0x1f] sm:$0x1]
        %v1489 = vlaneseq
        %v1490 = vshrl.u32 %v1489, 7
        %v1491 = vsub.s32 0, %v1490
        %v1492 = vrot.slane %v1488, %v1491
        %v1493 = vmul.f32 %v1492, %v1476
        %v1494 = vmul.f32 %v1492, %v1477
        %v1495 = vmul.f32 %v1492, %v1478
        %v1499 = vrot.slane %v1493, 1
        %v1500 = vrot.slane %v1494, 1
        %v1501 = vsel %vm293, %v1499, %v1500
        %v1502 = vrot.slane %v1495, 1
        %v1503 = vsel %vm293, %v1500, %v1502
        %v1506 = vadd.f32 %v1486, %v1501
        %v1507 = vadd.f32 %v1487, %v1503
        %v1508 = vld [vmem:[%s1 + $0x22] sm:$0x1]
        %v1509 = vlaneseq
        %v1510 = vshrl.u32 %v1509, 7
        %v1511 = vsub.s32 0, %v1510
        %v1512 = vrot.slane %v1508, %v1511
        %v1513 = vmul.f32 %v1512, %v1476
        %v1514 = vmul.f32 %v1512, %v1477
        %v1515 = vmul.f32 %v1512, %v1478
        %v1519 = vrot.slane %v1513, 2
        %v1520 = vrot.slane %v1514, 2
        %v1521 = vsel %vm314, %v1519, %v1520
        %v1522 = vrot.slane %v1515, 2
        %v1523 = vsel %vm314, %v1520, %v1522
        %v1526 = vadd.f32 %v1506, %v1521
        %v1527 = vadd.f32 %v1507, %v1523
        %1528 = vrot.lane.b32.xlu0 %v169, 72
        %v1529 = vpop.permute.xlu0 %1528
        %1530 = vrot.lane.b32.xlu0 %v170, 72
        %v1531 = vpop.permute.xlu0 %1530
        %1532 = vrot.lane.b32.xlu0 %v171, 72
        %v1533 = vpop.permute.xlu0 %1532
        %1537 = vrot.lane.b32.xlu0 %v169, 88
        %v1538 = vpop.permute.xlu0 %1537
        %1539 = vrot.lane.b32.xlu0 %v170, 88
        %v1540 = vpop.permute.xlu0 %1539
        %1541 = vrot.lane.b32.xlu0 %v171, 88
        %v1542 = vpop.permute.xlu0 %1541
        %1546 = vrot.lane.b32.xlu0 %v169, 104
        %v1547 = vpop.permute.xlu0 %1546
        %1548 = vrot.lane.b32.xlu0 %v170, 104
        %v1549 = vpop.permute.xlu0 %1548
        %1550 = vrot.lane.b32.xlu0 %v171, 104
        %v1551 = vpop.permute.xlu0 %1550
        %1555 = vrot.lane.b32.xlu0 %v169, 120
        %v1556 = vpop.permute.xlu0 %1555
        %1557 = vrot.lane.b32.xlu0 %v170, 120
        %v1558 = vpop.permute.xlu0 %1557
        %1559 = vrot.lane.b32.xlu0 %v171, 120
        %v1560 = vpop.permute.xlu0 %1559
        %1564 = vrot.lane.b32.xlu0 %v169, 8
        %v1565 = vpop.permute.xlu0 %1564
        %1566 = vrot.lane.b32.xlu0 %v170, 8
        %v1567 = vpop.permute.xlu0 %1566
        %1568 = vrot.lane.b32.xlu0 %v171, 8
        %v1569 = vpop.permute.xlu0 %1568
        %1573 = vrot.lane.b32.xlu0 %v169, 24
        %v1574 = vpop.permute.xlu0 %1573
        %1575 = vrot.lane.b32.xlu0 %v170, 24
        %v1576 = vpop.permute.xlu0 %1575
        %1577 = vrot.lane.b32.xlu0 %v171, 24
        %v1578 = vpop.permute.xlu0 %1577
        %1582 = vrot.lane.b32.xlu0 %v169, 40
        %v1583 = vpop.permute.xlu0 %1582
        %1584 = vrot.lane.b32.xlu0 %v170, 40
        %v1585 = vpop.permute.xlu0 %1584
        %1586 = vrot.lane.b32.xlu0 %v171, 40
        %v1587 = vpop.permute.xlu0 %1586
        %1591 = vrot.lane.b32.xlu0 %v169, 56
        %v1592 = vpop.permute.xlu0 %1591
        %1593 = vrot.lane.b32.xlu0 %v170, 56
        %v1594 = vpop.permute.xlu0 %1593
        %1595 = vrot.lane.b32.xlu0 %v171, 56
        %v1596 = vpop.permute.xlu0 %1595
        %v1600 = vsel %vm245, %v1529, %v1538
        %v1601 = vsel %vm245, %v1531, %v1540
        %v1602 = vsel %vm245, %v1533, %v1542
        %v1603 = vsel %vm249, %v1600, %v1547
        %v1604 = vsel %vm249, %v1601, %v1549
        %v1605 = vsel %vm249, %v1602, %v1551
        %v1606 = vsel %vm253, %v1603, %v1556
        %v1607 = vsel %vm253, %v1604, %v1558
        %v1608 = vsel %vm253, %v1605, %v1560
        %v1609 = vsel %vm257, %v1606, %v1565
        %v1610 = vsel %vm257, %v1607, %v1567
        %v1611 = vsel %vm257, %v1608, %v1569
        %v1612 = vsel %vm261, %v1609, %v1574
        %v1613 = vsel %vm261, %v1610, %v1576
        %v1614 = vsel %vm261, %v1611, %v1578
        %v1615 = vsel %vm265, %v1612, %v1583
        %v1616 = vsel %vm265, %v1613, %v1585
        %v1617 = vsel %vm265, %v1614, %v1587
        %v1618 = vsel %vm269, %v1615, %v1592
        %v1619 = vsel %vm269, %v1616, %v1594
        %v1620 = vsel %vm269, %v1617, %v1596
        %v1621 = vld [vmem:[%s1 + $0x1d] sm:$0x1]
        %v1622 = vlaneseq
        %v1623 = vshrl.u32 %v1622, 7
        %v1624 = vsub.s32 0, %v1623
        %v1625 = vrot.slane %v1621, %v1624
        %v1626 = vmul.f32 %v1625, %v1618
        %v1627 = vmul.f32 %v1625, %v1619
        %v1628 = vadd.f32 %v1526, %v1626
        %v1629 = vadd.f32 %v1527, %v1627
        %v1630 = vld [vmem:[%s1 + $0x20] sm:$0x1]
        %v1631 = vlaneseq
        %v1632 = vshrl.u32 %v1631, 7
        %v1633 = vsub.s32 0, %v1632
        %v1634 = vrot.slane %v1630, %v1633
        %v1635 = vmul.f32 %v1634, %v1618
        %v1636 = vmul.f32 %v1634, %v1619
        %v1637 = vmul.f32 %v1634, %v1620
        %v1641 = vrot.slane %v1635, 1
        %v1642 = vrot.slane %v1636, 1
        %v1643 = vsel %vm293, %v1641, %v1642
        %v1644 = vrot.slane %v1637, 1
        %v1645 = vsel %vm293, %v1642, %v1644
        %v1648 = vadd.f32 %v1628, %v1643
        %v1649 = vadd.f32 %v1629, %v1645
        %v1650 = vld [vmem:[%s1 + $0x23] sm:$0x1]
        %v1651 = vlaneseq
        %v1652 = vshrl.u32 %v1651, 7
        %v1653 = vsub.s32 0, %v1652
        %v1654 = vrot.slane %v1650, %v1653
        %v1655 = vmul.f32 %v1654, %v1618
        %v1656 = vmul.f32 %v1654, %v1619
        %v1657 = vmul.f32 %v1654, %v1620
        %v1661 = vrot.slane %v1655, 2
        %v1662 = vrot.slane %v1656, 2
        %v1663 = vsel %vm314, %v1661, %v1662
        %v1664 = vrot.slane %v1657, 2
        %v1665 = vsel %vm314, %v1662, %v1664
        %v1668 = vadd.f32 %v1648, %v1663
        %v1669 = vadd.f32 %v1649, %v1665
        %v1670 = vmax.f32 %v1668, 0.0
        %v1671 = vmax.f32 %v1669, 0.0
        %1672 = vst [vmem:[%s163] sm:$0xff] %v1670
        %1673 = vst [vmem:[%s163 + $0x8] sm:$0xff] %v1671
        %s1674 = sand.u32 %s93, 1
        %s1675 = scalar_lea.sflag [#allocation3], %s1674
        %s1676 = sand.u32 %s93, 1
        %s1677 = smul.addr %s1676, 16
        %s1678 = scalar_lea.vmem [#allocation2], %s1677
        // Predicated region
        $region33: #{tpu_custom_call.1} parent=31 // pred_check
          %p1679 = pneg %p103
        $region34: #{tpu_custom_call.1} parent=31 // pred_check_branch
          %1681 = sbr.rel (%p1679) target = $region36
        $region35: #{tpu_custom_call.1} parent=31 // pred_region
          %s1683 = ssub.s32 256, 256
          %1684 = vsyncadd %s1675, %s1683
          %s1685 = smul.addr %s17, 2
          %s1686 = smul.addr %s1685, 128
          %s1687 = scalar_lea.hbm %s3, %s1686
          %s1688 = sshll.u32 %s1678, 4
          %s1689 = int_to_ptr.vmem [resolvable:$true] %s1688
          %1694 = dma.vmem_to_hbm [thread:$0]  %s1689, 256, %s1687, %s1675, 128, 128, 8
        $region36: #{tpu_custom_call.1} parent=31 // pred_fallthru
          _
      $region32: #{tpu_custom_call.1} parent=5 // pred_fallthru
        _
      %p1695 = scmp.le.s32.totalorder 2, %s12
      // Predicated region
      $region37: #{tpu_custom_call.1} parent=5 // pred_check
        %p1696 = pneg %p1695
      $region38: #{tpu_custom_call.1} parent=5 // pred_check_branch
        %1698 = sbr.rel (%p1696) target = $region40
      $region39: #{tpu_custom_call.1} parent=5 // pred_region
        %s1699 = ssub.s32 %s12, 2
        // Predicated region
        $region41: #{tpu_custom_call.1} parent=39 // pred_check
          %p1700 = pneg %p109
        $region42: #{tpu_custom_call.1} parent=39 // pred_check_branch
          %1702 = sbr.rel (%p1700) target = $region44
        $region43: #{tpu_custom_call.1} parent=39 // pred_region
          %s1703 = sand.u32 %s94, 1
          %s1704 = scalar_lea.sflag [#allocation3], %s1703
          %s1705 = sand.u32 %s94, 1
          %s1706 = smul.addr %s1705, 16
          %s1707 = scalar_lea.vmem [#allocation2], %s1706
          %1708 = dma.done %s1704, 256
        $region44: #{tpu_custom_call.1} parent=39 // pred_fallthru
          _
      $region40: #{tpu_custom_call.1} parent=5 // pred_fallthru
        _
    $region6: #{tpu_custom_call.1} parent=1 // loop_footer
      %s16 = sadd.s32 1, %s12
    $region7: #{tpu_custom_call.1} parent=1 // loop_footer_branch
      %11 = sbr.rel target = $region3
    $region8: #{tpu_custom_call.1} parent=1 // loop_exit
      _
    %1709 = vsyncpa [#allocation3], 1
    %s1710 = scalar_lea.sflag [#allocation3], 1
    %1711 = vsyncpa %s1710, 1

</llo_original>
